<compile_context>
chip_gen: v7x
topology: tpu7x:2x2x1
jax: 0.10.0
libtpu: 0.0.40
codegen_flags: <defaults>
</compile_context>

<pallas_src>
import jax
import jax.numpy as jnp
from jax.experimental import pallas as pl
from jax.experimental.pallas import tpu as pltpu

BN_EPS = 1e-5

_SINGLE_STEP = pltpu.CompilerParams(dimension_semantics=("arbitrary",))


# ----------------------------------------------------------------------------
# Pallas kernels (channels-first slabs: matmul over (Cout,Cin) @ (Cin, L))
# ----------------------------------------------------------------------------
def _ffc_first_kernel(xl_ref, xg_ref, wll_ref, wgl_ref, wlg_ref, wc_ref, bc_ref,
                      ol_ref, og_ref, oc_ref):
    """Fused FFC first layer.

    xl : (N, in_cl, L)    xg : (N, in_cg, L)
    wll: (out_cl, in_cl)  wgl: (out_cl, in_cg)  wlg: (out_cg, in_cl)
    wc : (half, in_cg)    (BN scale folded)     bc : (half, 1)
    ol : (N, out_cl, L)   og : (N, out_cg, L)   oc : (N, half, L)
    """
    wll = wll_ref[...]
    wgl = wgl_ref[...]
    wlg = wlg_ref[...]
    wc = wc_ref[...]
    bc = bc_ref[...]
    for i in range(xl_ref.shape[0]):              # N is tiny and static
        xl = xl_ref[i]                            # (in_cl, L)
        xg = xg_ref[i]                            # (in_cg, L)
        ol_ref[i] = (jnp.dot(wll, xl, preferred_element_type=jnp.float32)
                     + jnp.dot(wgl, xg, preferred_element_type=jnp.float32))
        og_ref[i] = jnp.dot(wlg, xl, preferred_element_type=jnp.float32)
        oc_ref[i] = jnp.maximum(
            jnp.dot(wc, xg, preferred_element_type=jnp.float32) + bc, 0.0)


def _dual_fu_conv_kernel(a_ref, b_ref, wa_ref, ba_ref, wb_ref, bb_ref,
                         oa_ref, ob_ref):
    """Both FourierUnit 1x1 convs (main FU + LFU), folded BN + ReLU, one launch."""
    wa = wa_ref[...]
    ba = ba_ref[...]
    wb = wb_ref[...]
    bb = bb_ref[...]
    for i in range(a_ref.shape[0]):
        oa_ref[i] = jnp.maximum(
            jnp.dot(wa, a_ref[i], preferred_element_type=jnp.float32) + ba, 0.0)
        ob_ref[i] = jnp.maximum(
            jnp.dot(wb, b_ref[i], preferred_element_type=jnp.float32) + bb, 0.0)


def _sum3_conv_add_kernel(a_ref, b_ref, c_ref, w_ref, r_ref, o_ref):
    """o = r + w @ (a + b + c)   (SpectralTransform.conv2 fused with FFC add)."""
    w = w_ref[...]
    for i in range(a_ref.shape[0]):
        s = a_ref[i] + b_ref[i] + c_ref[i]
        o_ref[i] = r_ref[i] + jnp.dot(w, s, preferred_element_type=jnp.float32)


# ----------------------------------------------------------------------------
# Pallas wrappers (grid=(1,): whole arrays as single VMEM blocks)
# ----------------------------------------------------------------------------
def _full_spec(shape):
    zeros = (0,) * len(shape)
    return pl.BlockSpec(shape, lambda i, _z=zeros: _z)


def ffc_first_layer(xl, xg, wll, wgl, wlg, wc, bc):
    n, _, L = xl.shape
    out_shapes = (
        jax.ShapeDtypeStruct((n, wll.shape[0], L), jnp.float32),
        jax.ShapeDtypeStruct((n, wlg.shape[0], L), jnp.float32),
        jax.ShapeDtypeStruct((n, wc.shape[0], L), jnp.float32),
    )
    args = (xl, xg, wll, wgl, wlg, wc, bc)
    return pl.pallas_call(
        _ffc_first_kernel,
        out_shape=out_shapes,
        grid=(1,),
        in_specs=[_full_spec(t.shape) for t in args],
        out_specs=[_full_spec(s.shape) for s in out_shapes],
        compiler_params=_SINGLE_STEP,
    )(*args)


def dual_fu_conv(a, b, wa, ba, wb, bb):
    out_shapes = (jax.ShapeDtypeStruct(a.shape, jnp.float32),
                  jax.ShapeDtypeStruct(b.shape, jnp.float32))
    return pl.pallas_call(
        _dual_fu_conv_kernel,
        out_shape=out_shapes,
        grid=(1,),
        in_specs=[_full_spec(t.shape) for t in (a, b, wa, ba, wb, bb)],
        out_specs=[_full_spec(s.shape) for s in out_shapes],
        compiler_params=_SINGLE_STEP,
    )(a, b, wa, ba, wb, bb)


def sum3_conv_add(a, b, c, w, res):
    n, _, L = a.shape
    out_shape = jax.ShapeDtypeStruct((n, w.shape[0], L), jnp.float32)
    return pl.pallas_call(
        _sum3_conv_add_kernel,
        out_shape=out_shape,
        grid=(1,),
        in_specs=[_full_spec(t.shape) for t in (a, b, c, w, res)],
        out_specs=_full_spec(out_shape.shape),
        compiler_params=_SINGLE_STEP,
        input_output_aliases={4: 0},        # residual accumulates in place
    )(a, b, c, w, res)


# ----------------------------------------------------------------------------
# FourierUnit FFT plumbing (stays in jnp.fft; no Pallas TPU FFT primitive)
# ----------------------------------------------------------------------------
def _rfft_features(x):
    """x: (N, C, H, W) real -> (N, 2C, H*Wf), channels = [c0_re, c0_im, c1_re, ...]."""
    n, c, h, _ = x.shape
    ff = jnp.fft.rfft2(x, norm="ortho")                       # (N, C, H, Wf)
    wf = ff.shape[-1]
    feat = jnp.stack([jnp.real(ff), jnp.imag(ff)], axis=2)    # (N, C, 2, H, Wf)
    return feat.reshape(n, 2 * c, h * wf), wf


def _irfft_features(y, h, w, wf):
    """y: (N, 2C, H*Wf) -> (N, C, H, W) real (inverse of _rfft_features layout)."""
    n, c2, _ = y.shape
    c = c2 // 2
    y = y.reshape(n, c, 2, h, wf)
    comp = jax.lax.complex(y[:, :, 0], y[:, :, 1])
    return jnp.fft.irfft2(comp, s=(h, w), norm="ortho")


# ----------------------------------------------------------------------------
# One-time parameter preparation (outside the jitted forward): fold BN scales
# into the 1x1-conv weights, reshape biases to (C, 1) matmul operands.
# ----------------------------------------------------------------------------
def fold_params(params):
    sp = params["spec"]
    half = sp["conv1_w"].shape[0]
    return {
        "w_l2l": params["w_l2l"],
        "w_g2l": params["w_g2l"],
        "w_l2g": params["w_l2g"],
        "conv1_w": sp["conv1_w"] * sp["conv1_scale"][:, None],
        "conv1_b": sp["conv1_bias"].reshape(half, 1),
        "fu_w": sp["fu_w"] * sp["fu_scale"][:, None],
        "fu_b": sp["fu_bias"].reshape(-1, 1),
        "lfu_w": sp["lfu_w"] * sp["lfu_scale"][:, None],
        "lfu_b": sp["lfu_bias"].reshape(-1, 1),
        "conv2_w": sp["conv2_w"],
    }


# ----------------------------------------------------------------------------
# FFC forward (gated=False, ratio_gin=ratio_gout=0.5, stride=1, k=1)
# ----------------------------------------------------------------------------
def ffc_forward(fp, x_l, x_g):
    n, in_cl, h, w = x_l.shape
    in_cg = x_g.shape[1]
    hw = h * w
    half = fp["conv1_w"].shape[0]
    out_cg = fp["conv2_w"].shape[0]
    out_cl = fp["w_l2l"].shape[0]

    # ---- fused first layer: out_xl, l2g, spectral conv1 (one Pallas call) ----
    xl_slab = x_l.reshape(n, in_cl, hw)
    xg_slab = x_g.reshape(n, in_cg, hw)
    out_xl_f, l2g_f, x_st_f = ffc_first_layer(
        xl_slab, xg_slab, fp["w_l2l"], fp["w_g2l"], fp["w_l2g"],
        fp["conv1_w"], fp["conv1_b"])
    out_xl = out_xl_f.reshape(n, out_cl, h, w)
    x_st = x_st_f.reshape(n, half, h, w)

    # ---- FourierUnit features (main FU + LFU branch) ----
    # TODO(synk): rfft2/irfft2 have no Pallas TPU primitive; the two FFT pairs
    # act on different spatial sizes (HxW vs H/2xW/2) so they also cannot be
    # batched into a single FFT call.
    fu_feat, wf_fu = _rfft_features(x_st)
    xs0 = x_st[:, : half // 4]
    xs0 = jnp.concatenate(jnp.split(xs0, 2, axis=-2), axis=1)
    xs0 = jnp.concatenate(jnp.split(xs0, 2, axis=-1), axis=1)  # (N, half, H/2, W/2)
    lfu_feat, wf_lfu = _rfft_features(xs0)

    # ---- fused FU + LFU 1x1 convs (one Pallas call, folded BN + ReLU) ----
    fu_conv_f, lfu_conv_f = dual_fu_conv(
        fu_feat, lfu_feat, fp["fu_w"], fp["fu_b"], fp["lfu_w"], fp["lfu_b"])

    fu_out = _irfft_features(fu_conv_f, h, w, wf_fu)                  # (N, half, H, W)
    lfu_small = _irfft_features(lfu_conv_f, h // 2, w // 2, wf_lfu)   # (N, half, H/2, W/2)
    # Spatial 2x2 tiling of the LFU result via broadcast (no concat copies).
    xs = jnp.broadcast_to(
        lfu_small[:, :, None, :, None, :],
        (n, half, 2, h // 2, 2, w // 2)).reshape(n, half, h, w)

    # ---- fused conv2(x + fu + lfu) + l2g residual (one Pallas call) ----
    out_xg_f = sum3_conv_add(
        x_st_f,
        fu_out.reshape(n, half, hw),
        xs.reshape(n, half, hw),
        fp["conv2_w"], l2g_f)
    out_xg = out_xg_f.reshape(n, out_cg, h, w)
    return out_xl, out_xg


# ----------------------------------------------------------------------------
# Deterministic parameter init.  Weights stored PyTorch-style (Cout, Cin),
# i.e. exactly the squeezed (Cout, Cin, 1, 1) 1x1-conv weights.
# ----------------------------------------------------------------------------
def init_params(key, in_channels=16, out_channels=16, ratio_gin=0.5, ratio_gout=0.5):
    in_cg = int(in_channels * ratio_gin)
    in_cl = in_channels - in_cg
    out_cg = int(out_channels * ratio_gout)
    out_cl = out_channels - out_cg
    half = out_cg // 2                      # SpectralTransform hidden width
    keys = jax.random.split(key, 8)

    def w(k, cout, cin):
        return jax.random.normal(k, (cout, cin), jnp.float32) * 0.1

    bn_scale = lambda ch: jnp.full((ch,), (1.0 + BN_EPS) ** -0.5, jnp.float32)
    bn_bias = lambda ch: jnp.zeros((ch,), jnp.float32)

    return {
        "w_l2l": w(keys[0], out_cl, in_cl),
        "w_l2g": w(keys[1], out_cg, in_cl),
        "w_g2l": w(keys[2], out_cl, in_cg),
        "spec": {
            "conv1_w": w(keys[3], half, in_cg),
            "conv1_scale": bn_scale(half),
            "conv1_bias": bn_bias(half),
            "fu_w": w(keys[4], 2 * half, 2 * half),
            "fu_scale": bn_scale(2 * half),
            "fu_bias": bn_bias(2 * half),
            "lfu_w": w(keys[5], 2 * half, 2 * half),
            "lfu_scale": bn_scale(2 * half),
            "lfu_bias": bn_bias(2 * half),
            "conv2_w": w(keys[6], out_cg, half),
        },
    }


if __name__ == "__main__":
    key = jax.random.PRNGKey(0)
    kp, kx = jax.random.split(key)
    params = init_params(kp)
    folded = fold_params(params)   # one-time weight prep, outside the hot path

    # FFC tuple input (x_local, x_global): NCHW, 8 channels each.
    N, H, W = 2, 16, 16
    kxl, kxg = jax.random.split(kx)
    x_l = jax.random.normal(kxl, (N, 8, H, W), jnp.float32)
    x_g = jax.random.normal(kxg, (N, 8, H, W), jnp.float32)

    fwd = jax.jit(ffc_forward)
    out_xl, out_xg = fwd(folded, x_l, x_g)
    jax.block_until_ready(out_xl)
    jax.block_until_ready(out_xg)

    assert out_xl.shape == (N, 8, H, W), out_xl.shape
    assert out_xg.shape == (N, 8, H, W), out_xg.shape
    assert out_xl.dtype == jnp.float32 and out_xg.dtype == jnp.float32
    print("KERNEL_OK")
</pallas_src>

<mosaic_0001>
module attributes {stable_mosaic.version = 11 : i64} {
  func.func @_ffc_first_kernel(%arg0: i32, %arg1: memref<2x8x256xf32, #tpu.memory_space<vmem>>, %arg2: memref<2x8x256xf32, #tpu.memory_space<vmem>>, %arg3: memref<8x8xf32, #tpu.memory_space<vmem>>, %arg4: memref<8x8xf32, #tpu.memory_space<vmem>>, %arg5: memref<8x8xf32, #tpu.memory_space<vmem>>, %arg6: memref<4x8xf32, #tpu.memory_space<vmem>>, %arg7: memref<4x1xf32, #tpu.memory_space<vmem>>, %arg8: memref<2x8x256xf32, #tpu.memory_space<vmem>>, %arg9: memref<2x8x256xf32, #tpu.memory_space<vmem>>, %arg10: memref<2x4x256xf32, #tpu.memory_space<vmem>>) attributes {dimension_semantics = [#tpu.dimension_semantics<arbitrary>], iteration_bounds = array<i64: 1>, scalar_prefetch = 0 : i64, scratch_operands = 0 : i64, tpu.core_type = #tpu.core_type<tc>, window_params = [{pipeline_mode = #tpu.pipeline_mode<synchronous>, transform_indices = @transform_0, window_bounds = array<i64: 2, 8, 256>}, {pipeline_mode = #tpu.pipeline_mode<synchronous>, transform_indices = @transform_1, window_bounds = array<i64: 2, 8, 256>}, {pipeline_mode = #tpu.pipeline_mode<synchronous>, transform_indices = @transform_2, window_bounds = array<i64: 8, 8>}, {pipeline_mode = #tpu.pipeline_mode<synchronous>, transform_indices = @transform_3, window_bounds = array<i64: 8, 8>}, {pipeline_mode = #tpu.pipeline_mode<synchronous>, transform_indices = @transform_4, window_bounds = array<i64: 8, 8>}, {pipeline_mode = #tpu.pipeline_mode<synchronous>, transform_indices = @transform_5, window_bounds = array<i64: 4, 8>}, {pipeline_mode = #tpu.pipeline_mode<synchronous>, transform_indices = @transform_6, window_bounds = array<i64: 4, 1>}, {pipeline_mode = #tpu.pipeline_mode<synchronous>, transform_indices = @transform_7, window_bounds = array<i64: 2, 8, 256>}, {pipeline_mode = #tpu.pipeline_mode<synchronous>, transform_indices = @transform_8, window_bounds = array<i64: 2, 8, 256>}, {pipeline_mode = #tpu.pipeline_mode<synchronous>, transform_indices = @transform_9, window_bounds = array<i64: 2, 4, 256>}]} {
    %c0 = arith.constant 0 : index
    %c0_0 = arith.constant 0 : index
    %0 = vector.load %arg3[%c0, %c0_0] : memref<8x8xf32, #tpu.memory_space<vmem>>, vector<8x8xf32>
    %c0_1 = arith.constant 0 : index
    %c0_2 = arith.constant 0 : index
    %1 = vector.load %arg4[%c0_1, %c0_2] : memref<8x8xf32, #tpu.memory_space<vmem>>, vector<8x8xf32>
    %c0_3 = arith.constant 0 : index
    %c0_4 = arith.constant 0 : index
    %2 = vector.load %arg5[%c0_3, %c0_4] : memref<8x8xf32, #tpu.memory_space<vmem>>, vector<8x8xf32>
    %c0_5 = arith.constant 0 : index
    %c0_6 = arith.constant 0 : index
    %3 = vector.load %arg6[%c0_5, %c0_6] : memref<4x8xf32, #tpu.memory_space<vmem>>, vector<4x8xf32>
    %c0_7 = arith.constant 0 : index
    %c0_8 = arith.constant 0 : index
    %4 = vector.load %arg7[%c0_7, %c0_8] : memref<4x1xf32, #tpu.memory_space<vmem>>, vector<4x1xf32>
    %c0_9 = arith.constant 0 : index
    %c0_10 = arith.constant 0 : index
    %c0_11 = arith.constant 0 : index
    %5 = vector.load %arg1[%c0_9, %c0_10, %c0_11] : memref<2x8x256xf32, #tpu.memory_space<vmem>>, vector<1x8x256xf32>
    %6 = vector.shape_cast %5 : vector<1x8x256xf32> to vector<8x256xf32>
    %c0_12 = arith.constant 0 : index
    %c0_13 = arith.constant 0 : index
    %c0_14 = arith.constant 0 : index
    %7 = vector.load %arg2[%c0_12, %c0_13, %c0_14] : memref<2x8x256xf32, #tpu.memory_space<vmem>>, vector<1x8x256xf32>
    %8 = vector.shape_cast %7 : vector<1x8x256xf32> to vector<8x256xf32>
    %cst = arith.constant dense<0.000000e+00> : vector<8x256xf32>
    %9 = tpu.matmul %0, %6, %cst {dimension_numbers = #tpu.dot_dimension_numbers<[1], [0], [0], [1], [0, 0, 1, 1], [], []>} : vector<8x8xf32>, vector<8x256xf32>, vector<8x256xf32> -> vector<8x256xf32>
    %cst_15 = arith.constant dense<0.000000e+00> : vector<8x256xf32>
    %10 = tpu.matmul %1, %8, %cst_15 {dimension_numbers = #tpu.dot_dimension_numbers<[1], [0], [0], [1], [0, 0, 1, 1], [], []>} : vector<8x8xf32>, vector<8x256xf32>, vector<8x256xf32> -> vector<8x256xf32>
    %11 = arith.addf %9, %10 : vector<8x256xf32>
    %c0_16 = arith.constant 0 : index
    %c0_17 = arith.constant 0 : index
    %c0_18 = arith.constant 0 : index
    %12 = vector.load %arg8[%c0_16, %c0_17, %c0_18] : memref<2x8x256xf32, #tpu.memory_space<vmem>>, vector<1x8x256xf32>
    %13 = vector.shape_cast %12 : vector<1x8x256xf32> to vector<8x256xf32>
    %14 = vector.shape_cast %11 : vector<8x256xf32> to vector<1x8x256xf32>
    tpu.vector_store %arg8[%c0_16, %c0_17, %c0_18], %14 {strides = array<i32>} : memref<2x8x256xf32, #tpu.memory_space<vmem>>, vector<1x8x256xf32>,
    %cst_19 = arith.constant dense<0.000000e+00> : vector<8x256xf32>
    %15 = tpu.matmul %2, %6, %cst_19 {dimension_numbers = #tpu.dot_dimension_numbers<[1], [0], [0], [1], [0, 0, 1, 1], [], []>} : vector<8x8xf32>, vector<8x256xf32>, vector<8x256xf32> -> vector<8x256xf32>
    %c0_20 = arith.constant 0 : index
    %c0_21 = arith.constant 0 : index
    %c0_22 = arith.constant 0 : index
    %16 = vector.load %arg9[%c0_20, %c0_21, %c0_22] : memref<2x8x256xf32, #tpu.memory_space<vmem>>, vector<1x8x256xf32>
    %17 = vector.shape_cast %16 : vector<1x8x256xf32> to vector<8x256xf32>
    %18 = vector.shape_cast %15 : vector<8x256xf32> to vector<1x8x256xf32>
    tpu.vector_store %arg9[%c0_20, %c0_21, %c0_22], %18 {strides = array<i32>} : memref<2x8x256xf32, #tpu.memory_space<vmem>>, vector<1x8x256xf32>,
    %cst_23 = arith.constant dense<0.000000e+00> : vector<4x256xf32>
    %19 = tpu.matmul %3, %8, %cst_23 {dimension_numbers = #tpu.dot_dimension_numbers<[1], [0], [0], [1], [0, 0, 1, 1], [], []>} : vector<4x8xf32>, vector<8x256xf32>, vector<4x256xf32> -> vector<4x256xf32>
    %20 = vector.broadcast %4 : vector<4x1xf32> to vector<4x256xf32>
    %21 = arith.addf %19, %20 : vector<4x256xf32>
    %cst_24 = arith.constant 0.000000e+00 : f32
    %22 = vector.broadcast %cst_24 : f32 to vector<4x256xf32>
    %23 = arith.maximumf %21, %22 : vector<4x256xf32>
    %c0_25 = arith.constant 0 : index
    %c0_26 = arith.constant 0 : index
    %c0_27 = arith.constant 0 : index
    %24 = vector.load %arg10[%c0_25, %c0_26, %c0_27] : memref<2x4x256xf32, #tpu.memory_space<vmem>>, vector<1x4x256xf32>
    %25 = vector.shape_cast %24 : vector<1x4x256xf32> to vector<4x256xf32>
    %26 = vector.shape_cast %23 : vector<4x256xf32> to vector<1x4x256xf32>
    tpu.vector_store %arg10[%c0_25, %c0_26, %c0_27], %26 {strides = array<i32>} : memref<2x4x256xf32, #tpu.memory_space<vmem>>, vector<1x4x256xf32>,
    %c1 = arith.constant 1 : index
    %c0_28 = arith.constant 0 : index
    %c0_29 = arith.constant 0 : index
    %27 = vector.load %arg1[%c1, %c0_28, %c0_29] : memref<2x8x256xf32, #tpu.memory_space<vmem>>, vector<1x8x256xf32>
    %28 = vector.shape_cast %27 : vector<1x8x256xf32> to vector<8x256xf32>
    %c1_30 = arith.constant 1 : index
    %c0_31 = arith.constant 0 : index
    %c0_32 = arith.constant 0 : index
    %29 = vector.load %arg2[%c1_30, %c0_31, %c0_32] : memref<2x8x256xf32, #tpu.memory_space<vmem>>, vector<1x8x256xf32>
    %30 = vector.shape_cast %29 : vector<1x8x256xf32> to vector<8x256xf32>
    %cst_33 = arith.constant dense<0.000000e+00> : vector<8x256xf32>
    %31 = tpu.matmul %0, %28, %cst_33 {dimension_numbers = #tpu.dot_dimension_numbers<[1], [0], [0], [1], [0, 0, 1, 1], [], []>} : vector<8x8xf32>, vector<8x256xf32>, vector<8x256xf32> -> vector<8x256xf32>
    %cst_34 = arith.constant dense<0.000000e+00> : vector<8x256xf32>
    %32 = tpu.matmul %1, %30, %cst_34 {dimension_numbers = #tpu.dot_dimension_numbers<[1], [0], [0], [1], [0, 0, 1, 1], [], []>} : vector<8x8xf32>, vector<8x256xf32>, vector<8x256xf32> -> vector<8x256xf32>
    %33 = arith.addf %31, %32 : vector<8x256xf32>
    %c1_35 = arith.constant 1 : index
    %c0_36 = arith.constant 0 : index
    %c0_37 = arith.constant 0 : index
    %34 = vector.load %arg8[%c1_35, %c0_36, %c0_37] : memref<2x8x256xf32, #tpu.memory_space<vmem>>, vector<1x8x256xf32>
    %35 = vector.shape_cast %34 : vector<1x8x256xf32> to vector<8x256xf32>
    %36 = vector.shape_cast %33 : vector<8x256xf32> to vector<1x8x256xf32>
    tpu.vector_store %arg8[%c1_35, %c0_36, %c0_37], %36 {strides = array<i32>} : memref<2x8x256xf32, #tpu.memory_space<vmem>>, vector<1x8x256xf32>,
    %cst_38 = arith.constant dense<0.000000e+00> : vector<8x256xf32>
    %37 = tpu.matmul %2, %28, %cst_38 {dimension_numbers = #tpu.dot_dimension_numbers<[1], [0], [0], [1], [0, 0, 1, 1], [], []>} : vector<8x8xf32>, vector<8x256xf32>, vector<8x256xf32> -> vector<8x256xf32>
    %c1_39 = arith.constant 1 : index
    %c0_40 = arith.constant 0 : index
    %c0_41 = arith.constant 0 : index
    %38 = vector.load %arg9[%c1_39, %c0_40, %c0_41] : memref<2x8x256xf32, #tpu.memory_space<vmem>>, vector<1x8x256xf32>
    %39 = vector.shape_cast %38 : vector<1x8x256xf32> to vector<8x256xf32>
    %40 = vector.shape_cast %37 : vector<8x256xf32> to vector<1x8x256xf32>
    tpu.vector_store %arg9[%c1_39, %c0_40, %c0_41], %40 {strides = array<i32>} : memref<2x8x256xf32, #tpu.memory_space<vmem>>, vector<1x8x256xf32>,
    %cst_42 = arith.constant dense<0.000000e+00> : vector<4x256xf32>
    %41 = tpu.matmul %3, %30, %cst_42 {dimension_numbers = #tpu.dot_dimension_numbers<[1], [0], [0], [1], [0, 0, 1, 1], [], []>} : vector<4x8xf32>, vector<8x256xf32>, vector<4x256xf32> -> vector<4x256xf32>
    %42 = vector.broadcast %4 : vector<4x1xf32> to vector<4x256xf32>
    %43 = arith.addf %41, %42 : vector<4x256xf32>
    %cst_43 = arith.constant 0.000000e+00 : f32
    %44 = vector.broadcast %cst_43 : f32 to vector<4x256xf32>
    %45 = arith.maximumf %43, %44 : vector<4x256xf32>
    %c1_44 = arith.constant 1 : index
    %c0_45 = arith.constant 0 : index
    %c0_46 = arith.constant 0 : index
    %46 = vector.load %arg10[%c1_44, %c0_45, %c0_46] : memref<2x4x256xf32, #tpu.memory_space<vmem>>, vector<1x4x256xf32>
    %47 = vector.shape_cast %46 : vector<1x4x256xf32> to vector<4x256xf32>
    %48 = vector.shape_cast %45 : vector<4x256xf32> to vector<1x4x256xf32>
    tpu.vector_store %arg10[%c1_44, %c0_45, %c0_46], %48 {strides = array<i32>} : memref<2x4x256xf32, #tpu.memory_space<vmem>>, vector<1x4x256xf32>,
    return
  }
  func.func @transform_0(%arg0: i32) -> (i32, i32, i32) {
    %c0_i32 = arith.constant 0 : i32
    %c0_i32_0 = arith.constant 0 : i32
    %c0_i32_1 = arith.constant 0 : i32
    %c0_i32_2 = arith.constant 0 : i32
    return %c0_i32, %c0_i32_0, %c0_i32_1 : i32, i32, i32
  }
  func.func @transform_1(%arg0: i32) -> (i32, i32, i32) {
    %c0_i32 = arith.constant 0 : i32
    %c0_i32_0 = arith.constant 0 : i32
    %c0_i32_1 = arith.constant 0 : i32
    %c0_i32_2 = arith.constant 0 : i32
    return %c0_i32, %c0_i32_0, %c0_i32_1 : i32, i32, i32
  }
  func.func @transform_2(%arg0: i32) -> (i32, i32) {
    %c0_i32 = arith.constant 0 : i32
    %c0_i32_0 = arith.constant 0 : i32
    %c0_i32_1 = arith.constant 0 : i32
    return %c0_i32, %c0_i32_0 : i32, i32
  }
  func.func @transform_3(%arg0: i32) -> (i32, i32) {
    %c0_i32 = arith.constant 0 : i32
    %c0_i32_0 = arith.constant 0 : i32
    %c0_i32_1 = arith.constant 0 : i32
    return %c0_i32, %c0_i32_0 : i32, i32
  }
  func.func @transform_4(%arg0: i32) -> (i32, i32) {
    %c0_i32 = arith.constant 0 : i32
    %c0_i32_0 = arith.constant 0 : i32
    %c0_i32_1 = arith.constant 0 : i32
    return %c0_i32, %c0_i32_0 : i32, i32
  }
  func.func @transform_5(%arg0: i32) -> (i32, i32) {
    %c0_i32 = arith.constant 0 : i32
    %c0_i32_0 = arith.constant 0 : i32
    %c0_i32_1 = arith.constant 0 : i32
    return %c0_i32, %c0_i32_0 : i32, i32
  }
  func.func @transform_6(%arg0: i32) -> (i32, i32) {
    %c0_i32 = arith.constant 0 : i32
    %c0_i32_0 = arith.constant 0 : i32
    %c0_i32_1 = arith.constant 0 : i32
    return %c0_i32, %c0_i32_0 : i32, i32
  }
  func.func @transform_7(%arg0: i32) -> (i32, i32, i32) {
    %c0_i32 = arith.constant 0 : i32
    %c0_i32_0 = arith.constant 0 : i32
    %c0_i32_1 = arith.constant 0 : i32
    %c0_i32_2 = arith.constant 0 : i32
    return %c0_i32, %c0_i32_0, %c0_i32_1 : i32, i32, i32
  }
  func.func @transform_8(%arg0: i32) -> (i32, i32, i32) {
    %c0_i32 = arith.constant 0 : i32
    %c0_i32_0 = arith.constant 0 : i32
    %c0_i32_1 = arith.constant 0 : i32
    %c0_i32_2 = arith.constant 0 : i32
    return %c0_i32, %c0_i32_0, %c0_i32_1 : i32, i32, i32
  }
  func.func @transform_9(%arg0: i32) -> (i32, i32, i32) {
    %c0_i32 = arith.constant 0 : i32
    %c0_i32_0 = arith.constant 0 : i32
    %c0_i32_1 = arith.constant 0 : i32
    %c0_i32_2 = arith.constant 0 : i32
    return %c0_i32, %c0_i32_0, %c0_i32_1 : i32, i32, i32
  }
}

module attributes {stable_mosaic.version = 11 : i64} {
  func.func @_dual_fu_conv_kernel(%arg0: i32, %arg1: memref<2x8x144xf32, #tpu.memory_space<vmem>>, %arg2: memref<2x8x40xf32, #tpu.memory_space<vmem>>, %arg3: memref<8x8xf32, #tpu.memory_space<vmem>>, %arg4: memref<8x1xf32, #tpu.memory_space<vmem>>, %arg5: memref<8x8xf32, #tpu.memory_space<vmem>>, %arg6: memref<8x1xf32, #tpu.memory_space<vmem>>, %arg7: memref<2x8x144xf32, #tpu.memory_space<vmem>>, %arg8: memref<2x8x40xf32, #tpu.memory_space<vmem>>) attributes {dimension_semantics = [#tpu.dimension_semantics<arbitrary>], iteration_bounds = array<i64: 1>, scalar_prefetch = 0 : i64, scratch_operands = 0 : i64, tpu.core_type = #tpu.core_type<tc>, window_params = [{pipeline_mode = #tpu.pipeline_mode<synchronous>, transform_indices = @transform_0, window_bounds = array<i64: 2, 8, 144>}, {pipeline_mode = #tpu.pipeline_mode<synchronous>, transform_indices = @transform_1, window_bounds = array<i64: 2, 8, 40>}, {pipeline_mode = #tpu.pipeline_mode<synchronous>, transform_indices = @transform_2, window_bounds = array<i64: 8, 8>}, {pipeline_mode = #tpu.pipeline_mode<synchronous>, transform_indices = @transform_3, window_bounds = array<i64: 8, 1>}, {pipeline_mode = #tpu.pipeline_mode<synchronous>, transform_indices = @transform_4, window_bounds = array<i64: 8, 8>}, {pipeline_mode = #tpu.pipeline_mode<synchronous>, transform_indices = @transform_5, window_bounds = array<i64: 8, 1>}, {pipeline_mode = #tpu.pipeline_mode<synchronous>, transform_indices = @transform_6, window_bounds = array<i64: 2, 8, 144>}, {pipeline_mode = #tpu.pipeline_mode<synchronous>, transform_indices = @transform_7, window_bounds = array<i64: 2, 8, 40>}]} {
    %c0 = arith.constant 0 : index
    %c0_0 = arith.constant 0 : index
    %0 = vector.load %arg3[%c0, %c0_0] : memref<8x8xf32, #tpu.memory_space<vmem>>, vector<8x8xf32>
    %c0_1 = arith.constant 0 : index
    %c0_2 = arith.constant 0 : index
    %1 = vector.load %arg4[%c0_1, %c0_2] : memref<8x1xf32, #tpu.memory_space<vmem>>, vector<8x1xf32>
    %c0_3 = arith.constant 0 : index
    %c0_4 = arith.constant 0 : index
    %2 = vector.load %arg5[%c0_3, %c0_4] : memref<8x8xf32, #tpu.memory_space<vmem>>, vector<8x8xf32>
    %c0_5 = arith.constant 0 : index
    %c0_6 = arith.constant 0 : index
    %3 = vector.load %arg6[%c0_5, %c0_6] : memref<8x1xf32, #tpu.memory_space<vmem>>, vector<8x1xf32>
    %c0_7 = arith.constant 0 : index
    %c0_8 = arith.constant 0 : index
    %c0_9 = arith.constant 0 : index
    %4 = vector.load %arg1[%c0_7, %c0_8, %c0_9] : memref<2x8x144xf32, #tpu.memory_space<vmem>>, vector<1x8x144xf32>
    %5 = vector.shape_cast %4 : vector<1x8x144xf32> to vector<8x144xf32>
    %cst = arith.constant dense<0.000000e+00> : vector<8x144xf32>
    %6 = tpu.matmul %0, %5, %cst {dimension_numbers = #tpu.dot_dimension_numbers<[1], [0], [0], [1], [0, 0, 1, 1], [], []>} : vector<8x8xf32>, vector<8x144xf32>, vector<8x144xf32> -> vector<8x144xf32>
    %7 = vector.broadcast %1 : vector<8x1xf32> to vector<8x144xf32>
    %8 = arith.addf %6, %7 : vector<8x144xf32>
    %cst_10 = arith.constant 0.000000e+00 : f32
    %9 = vector.broadcast %cst_10 : f32 to vector<8x144xf32>
    %10 = arith.maximumf %8, %9 : vector<8x144xf32>
    %c0_11 = arith.constant 0 : index
    %c0_12 = arith.constant 0 : index
    %c0_13 = arith.constant 0 : index
    %11 = vector.load %arg7[%c0_11, %c0_12, %c0_13] : memref<2x8x144xf32, #tpu.memory_space<vmem>>, vector<1x8x144xf32>
    %12 = vector.shape_cast %11 : vector<1x8x144xf32> to vector<8x144xf32>
    %13 = vector.shape_cast %10 : vector<8x144xf32> to vector<1x8x144xf32>
    tpu.vector_store %arg7[%c0_11, %c0_12, %c0_13], %13 {strides = array<i32>} : memref<2x8x144xf32, #tpu.memory_space<vmem>>, vector<1x8x144xf32>,
    %c0_14 = arith.constant 0 : index
    %c0_15 = arith.constant 0 : index
    %c0_16 = arith.constant 0 : index
    %14 = vector.load %arg2[%c0_14, %c0_15, %c0_16] : memref<2x8x40xf32, #tpu.memory_space<vmem>>, vector<1x8x40xf32>
    %15 = vector.shape_cast %14 : vector<1x8x40xf32> to vector<8x40xf32>
    %cst_17 = arith.constant dense<0.000000e+00> : vector<8x40xf32>
    %16 = tpu.matmul %2, %15, %cst_17 {dimension_numbers = #tpu.dot_dimension_numbers<[1], [0], [0], [1], [0, 0, 1, 1], [], []>} : vector<8x8xf32>, vector<8x40xf32>, vector<8x40xf32> -> vector<8x40xf32>
    %17 = vector.broadcast %3 : vector<8x1xf32> to vector<8x40xf32>
    %18 = arith.addf %16, %17 : vector<8x40xf32>
    %cst_18 = arith.constant 0.000000e+00 : f32
    %19 = vector.broadcast %cst_18 : f32 to vector<8x40xf32>
    %20 = arith.maximumf %18, %19 : vector<8x40xf32>
    %c0_19 = arith.constant 0 : index
    %c0_20 = arith.constant 0 : index
    %c0_21 = arith.constant 0 : index
    %21 = vector.load %arg8[%c0_19, %c0_20, %c0_21] : memref<2x8x40xf32, #tpu.memory_space<vmem>>, vector<1x8x40xf32>
    %22 = vector.shape_cast %21 : vector<1x8x40xf32> to vector<8x40xf32>
    %23 = vector.shape_cast %20 : vector<8x40xf32> to vector<1x8x40xf32>
    tpu.vector_store %arg8[%c0_19, %c0_20, %c0_21], %23 {strides = array<i32>} : memref<2x8x40xf32, #tpu.memory_space<vmem>>, vector<1x8x40xf32>,
    %c1 = arith.constant 1 : index
    %c0_22 = arith.constant 0 : index
    %c0_23 = arith.constant 0 : index
    %24 = vector.load %arg1[%c1, %c0_22, %c0_23] : memref<2x8x144xf32, #tpu.memory_space<vmem>>, vector<1x8x144xf32>
    %25 = vector.shape_cast %24 : vector<1x8x144xf32> to vector<8x144xf32>
    %cst_24 = arith.constant dense<0.000000e+00> : vector<8x144xf32>
    %26 = tpu.matmul %0, %25, %cst_24 {dimension_numbers = #tpu.dot_dimension_numbers<[1], [0], [0], [1], [0, 0, 1, 1], [], []>} : vector<8x8xf32>, vector<8x144xf32>, vector<8x144xf32> -> vector<8x144xf32>
    %27 = vector.broadcast %1 : vector<8x1xf32> to vector<8x144xf32>
    %28 = arith.addf %26, %27 : vector<8x144xf32>
    %cst_25 = arith.constant 0.000000e+00 : f32
    %29 = vector.broadcast %cst_25 : f32 to vector<8x144xf32>
    %30 = arith.maximumf %28, %29 : vector<8x144xf32>
    %c1_26 = arith.constant 1 : index
    %c0_27 = arith.constant 0 : index
    %c0_28 = arith.constant 0 : index
    %31 = vector.load %arg7[%c1_26, %c0_27, %c0_28] : memref<2x8x144xf32, #tpu.memory_space<vmem>>, vector<1x8x144xf32>
    %32 = vector.shape_cast %31 : vector<1x8x144xf32> to vector<8x144xf32>
    %33 = vector.shape_cast %30 : vector<8x144xf32> to vector<1x8x144xf32>
    tpu.vector_store %arg7[%c1_26, %c0_27, %c0_28], %33 {strides = array<i32>} : memref<2x8x144xf32, #tpu.memory_space<vmem>>, vector<1x8x144xf32>,
    %c1_29 = arith.constant 1 : index
    %c0_30 = arith.constant 0 : index
    %c0_31 = arith.constant 0 : index
    %34 = vector.load %arg2[%c1_29, %c0_30, %c0_31] : memref<2x8x40xf32, #tpu.memory_space<vmem>>, vector<1x8x40xf32>
    %35 = vector.shape_cast %34 : vector<1x8x40xf32> to vector<8x40xf32>
    %cst_32 = arith.constant dense<0.000000e+00> : vector<8x40xf32>
    %36 = tpu.matmul %2, %35, %cst_32 {dimension_numbers = #tpu.dot_dimension_numbers<[1], [0], [0], [1], [0, 0, 1, 1], [], []>} : vector<8x8xf32>, vector<8x40xf32>, vector<8x40xf32> -> vector<8x40xf32>
    %37 = vector.broadcast %3 : vector<8x1xf32> to vector<8x40xf32>
    %38 = arith.addf %36, %37 : vector<8x40xf32>
    %cst_33 = arith.constant 0.000000e+00 : f32
    %39 = vector.broadcast %cst_33 : f32 to vector<8x40xf32>
    %40 = arith.maximumf %38, %39 : vector<8x40xf32>
    %c1_34 = arith.constant 1 : index
    %c0_35 = arith.constant 0 : index
    %c0_36 = arith.constant 0 : index
    %41 = vector.load %arg8[%c1_34, %c0_35, %c0_36] : memref<2x8x40xf32, #tpu.memory_space<vmem>>, vector<1x8x40xf32>
    %42 = vector.shape_cast %41 : vector<1x8x40xf32> to vector<8x40xf32>
    %43 = vector.shape_cast %40 : vector<8x40xf32> to vector<1x8x40xf32>
    tpu.vector_store %arg8[%c1_34, %c0_35, %c0_36], %43 {strides = array<i32>} : memref<2x8x40xf32, #tpu.memory_space<vmem>>, vector<1x8x40xf32>,
    return
  }
  func.func @transform_0(%arg0: i32) -> (i32, i32, i32) {
    %c0_i32 = arith.constant 0 : i32
    %c0_i32_0 = arith.constant 0 : i32
    %c0_i32_1 = arith.constant 0 : i32
    %c0_i32_2 = arith.constant 0 : i32
    return %c0_i32, %c0_i32_0, %c0_i32_1 : i32, i32, i32
  }
  func.func @transform_1(%arg0: i32) -> (i32, i32, i32) {
    %c0_i32 = arith.constant 0 : i32
    %c0_i32_0 = arith.constant 0 : i32
    %c0_i32_1 = arith.constant 0 : i32
    %c0_i32_2 = arith.constant 0 : i32
    return %c0_i32, %c0_i32_0, %c0_i32_1 : i32, i32, i32
  }
  func.func @transform_2(%arg0: i32) -> (i32, i32) {
    %c0_i32 = arith.constant 0 : i32
    %c0_i32_0 = arith.constant 0 : i32
    %c0_i32_1 = arith.constant 0 : i32
    return %c0_i32, %c0_i32_0 : i32, i32
  }
  func.func @transform_3(%arg0: i32) -> (i32, i32) {
    %c0_i32 = arith.constant 0 : i32
    %c0_i32_0 = arith.constant 0 : i32
    %c0_i32_1 = arith.constant 0 : i32
    return %c0_i32, %c0_i32_0 : i32, i32
  }
  func.func @transform_4(%arg0: i32) -> (i32, i32) {
    %c0_i32 = arith.constant 0 : i32
    %c0_i32_0 = arith.constant 0 : i32
    %c0_i32_1 = arith.constant 0 : i32
    return %c0_i32, %c0_i32_0 : i32, i32
  }
  func.func @transform_5(%arg0: i32) -> (i32, i32) {
    %c0_i32 = arith.constant 0 : i32
    %c0_i32_0 = arith.constant 0 : i32
    %c0_i32_1 = arith.constant 0 : i32
    return %c0_i32, %c0_i32_0 : i32, i32
  }
  func.func @transform_6(%arg0: i32) -> (i32, i32, i32) {
    %c0_i32 = arith.constant 0 : i32
    %c0_i32_0 = arith.constant 0 : i32
    %c0_i32_1 = arith.constant 0 : i32
    %c0_i32_2 = arith.constant 0 : i32
    return %c0_i32, %c0_i32_0, %c0_i32_1 : i32, i32, i32
  }
  func.func @transform_7(%arg0: i32) -> (i32, i32, i32) {
    %c0_i32 = arith.constant 0 : i32
    %c0_i32_0 = arith.constant 0 : i32
    %c0_i32_1 = arith.constant 0 : i32
    %c0_i32_2 = arith.constant 0 : i32
    return %c0_i32, %c0_i32_0, %c0_i32_1 : i32, i32, i32
  }
}

module attributes {stable_mosaic.version = 11 : i64} {
  func.func @_sum3_conv_add_kernel(%arg0: i32, %arg1: memref<2x4x256xf32, #tpu.memory_space<vmem>>, %arg2: memref<2x4x256xf32, #tpu.memory_space<vmem>>, %arg3: memref<2x4x256xf32, #tpu.memory_space<vmem>>, %arg4: memref<8x4xf32, #tpu.memory_space<vmem>>, %arg5: memref<2x8x256xf32, #tpu.memory_space<vmem>>, %arg6: memref<2x8x256xf32, #tpu.memory_space<vmem>>) attributes {dimension_semantics = [#tpu.dimension_semantics<arbitrary>], iteration_bounds = array<i64: 1>, scalar_prefetch = 0 : i64, scratch_operands = 0 : i64, tpu.core_type = #tpu.core_type<tc>, window_params = [{pipeline_mode = #tpu.pipeline_mode<synchronous>, transform_indices = @transform_0, window_bounds = array<i64: 2, 4, 256>}, {pipeline_mode = #tpu.pipeline_mode<synchronous>, transform_indices = @transform_1, window_bounds = array<i64: 2, 4, 256>}, {pipeline_mode = #tpu.pipeline_mode<synchronous>, transform_indices = @transform_2, window_bounds = array<i64: 2, 4, 256>}, {pipeline_mode = #tpu.pipeline_mode<synchronous>, transform_indices = @transform_3, window_bounds = array<i64: 8, 4>}, {pipeline_mode = #tpu.pipeline_mode<synchronous>, transform_indices = @transform_4, window_bounds = array<i64: 2, 8, 256>}, {pipeline_mode = #tpu.pipeline_mode<synchronous>, transform_indices = @transform_5, window_bounds = array<i64: 2, 8, 256>}]} {
    %c0 = arith.constant 0 : index
    %c0_0 = arith.constant 0 : index
    %0 = vector.load %arg4[%c0, %c0_0] : memref<8x4xf32, #tpu.memory_space<vmem>>, vector<8x4xf32>
    %c0_1 = arith.constant 0 : index
    %c0_2 = arith.constant 0 : index
    %c0_3 = arith.constant 0 : index
    %1 = vector.load %arg1[%c0_1, %c0_2, %c0_3] : memref<2x4x256xf32, #tpu.memory_space<vmem>>, vector<1x4x256xf32>
    %2 = vector.shape_cast %1 : vector<1x4x256xf32> to vector<4x256xf32>
    %c0_4 = arith.constant 0 : index
    %c0_5 = arith.constant 0 : index
    %c0_6 = arith.constant 0 : index
    %3 = vector.load %arg2[%c0_4, %c0_5, %c0_6] : memref<2x4x256xf32, #tpu.memory_space<vmem>>, vector<1x4x256xf32>
    %4 = vector.shape_cast %3 : vector<1x4x256xf32> to vector<4x256xf32>
    %5 = arith.addf %2, %4 : vector<4x256xf32>
    %c0_7 = arith.constant 0 : index
    %c0_8 = arith.constant 0 : index
    %c0_9 = arith.constant 0 : index
    %6 = vector.load %arg3[%c0_7, %c0_8, %c0_9] : memref<2x4x256xf32, #tpu.memory_space<vmem>>, vector<1x4x256xf32>
    %7 = vector.shape_cast %6 : vector<1x4x256xf32> to vector<4x256xf32>
    %8 = arith.addf %5, %7 : vector<4x256xf32>
    %c0_10 = arith.constant 0 : index
    %c0_11 = arith.constant 0 : index
    %c0_12 = arith.constant 0 : index
    %9 = vector.load %arg5[%c0_10, %c0_11, %c0_12] : memref<2x8x256xf32, #tpu.memory_space<vmem>>, vector<1x8x256xf32>
    %10 = vector.shape_cast %9 : vector<1x8x256xf32> to vector<8x256xf32>
    %cst = arith.constant dense<0.000000e+00> : vector<8x256xf32>
    %11 = tpu.matmul %0, %8, %cst {dimension_numbers = #tpu.dot_dimension_numbers<[1], [0], [0], [1], [0, 0, 1, 1], [], []>} : vector<8x4xf32>, vector<4x256xf32>, vector<8x256xf32> -> vector<8x256xf32>
    %12 = arith.addf %10, %11 : vector<8x256xf32>
    %c0_13 = arith.constant 0 : index
    %c0_14 = arith.constant 0 : index
    %c0_15 = arith.constant 0 : index
    %13 = vector.load %arg6[%c0_13, %c0_14, %c0_15] : memref<2x8x256xf32, #tpu.memory_space<vmem>>, vector<1x8x256xf32>
    %14 = vector.shape_cast %13 : vector<1x8x256xf32> to vector<8x256xf32>
    %15 = vector.shape_cast %12 : vector<8x256xf32> to vector<1x8x256xf32>
    tpu.vector_store %arg6[%c0_13, %c0_14, %c0_15], %15 {strides = array<i32>} : memref<2x8x256xf32, #tpu.memory_space<vmem>>, vector<1x8x256xf32>,
    %c1 = arith.constant 1 : index
    %c0_16 = arith.constant 0 : index
    %c0_17 = arith.constant 0 : index
    %16 = vector.load %arg1[%c1, %c0_16, %c0_17] : memref<2x4x256xf32, #tpu.memory_space<vmem>>, vector<1x4x256xf32>
    %17 = vector.shape_cast %16 : vector<1x4x256xf32> to vector<4x256xf32>
    %c1_18 = arith.constant 1 : index
    %c0_19 = arith.constant 0 : index
    %c0_20 = arith.constant 0 : index
    %18 = vector.load %arg2[%c1_18, %c0_19, %c0_20] : memref<2x4x256xf32, #tpu.memory_space<vmem>>, vector<1x4x256xf32>
    %19 = vector.shape_cast %18 : vector<1x4x256xf32> to vector<4x256xf32>
    %20 = arith.addf %17, %19 : vector<4x256xf32>
    %c1_21 = arith.constant 1 : index
    %c0_22 = arith.constant 0 : index
    %c0_23 = arith.constant 0 : index
    %21 = vector.load %arg3[%c1_21, %c0_22, %c0_23] : memref<2x4x256xf32, #tpu.memory_space<vmem>>, vector<1x4x256xf32>
    %22 = vector.shape_cast %21 : vector<1x4x256xf32> to vector<4x256xf32>
    %23 = arith.addf %20, %22 : vector<4x256xf32>
    %c1_24 = arith.constant 1 : index
    %c0_25 = arith.constant 0 : index
    %c0_26 = arith.constant 0 : index
    %24 = vector.load %arg5[%c1_24, %c0_25, %c0_26] : memref<2x8x256xf32, #tpu.memory_space<vmem>>, vector<1x8x256xf32>
    %25 = vector.shape_cast %24 : vector<1x8x256xf32> to vector<8x256xf32>
    %cst_27 = arith.constant dense<0.000000e+00> : vector<8x256xf32>
    %26 = tpu.matmul %0, %23, %cst_27 {dimension_numbers = #tpu.dot_dimension_numbers<[1], [0], [0], [1], [0, 0, 1, 1], [], []>} : vector<8x4xf32>, vector<4x256xf32>, vector<8x256xf32> -> vector<8x256xf32>
    %27 = arith.addf %25, %26 : vector<8x256xf32>
    %c1_28 = arith.constant 1 : index
    %c0_29 = arith.constant 0 : index
    %c0_30 = arith.constant 0 : index
    %28 = vector.load %arg6[%c1_28, %c0_29, %c0_30] : memref<2x8x256xf32, #tpu.memory_space<vmem>>, vector<1x8x256xf32>
    %29 = vector.shape_cast %28 : vector<1x8x256xf32> to vector<8x256xf32>
    %30 = vector.shape_cast %27 : vector<8x256xf32> to vector<1x8x256xf32>
    tpu.vector_store %arg6[%c1_28, %c0_29, %c0_30], %30 {strides = array<i32>} : memref<2x8x256xf32, #tpu.memory_space<vmem>>, vector<1x8x256xf32>,
    return
  }
  func.func @transform_0(%arg0: i32) -> (i32, i32, i32) {
    %c0_i32 = arith.constant 0 : i32
    %c0_i32_0 = arith.constant 0 : i32
    %c0_i32_1 = arith.constant 0 : i32
    %c0_i32_2 = arith.constant 0 : i32
    return %c0_i32, %c0_i32_0, %c0_i32_1 : i32, i32, i32
  }
  func.func @transform_1(%arg0: i32) -> (i32, i32, i32) {
    %c0_i32 = arith.constant 0 : i32
    %c0_i32_0 = arith.constant 0 : i32
    %c0_i32_1 = arith.constant 0 : i32
    %c0_i32_2 = arith.constant 0 : i32
    return %c0_i32, %c0_i32_0, %c0_i32_1 : i32, i32, i32
  }
  func.func @transform_2(%arg0: i32) -> (i32, i32, i32) {
    %c0_i32 = arith.constant 0 : i32
    %c0_i32_0 = arith.constant 0 : i32
    %c0_i32_1 = arith.constant 0 : i32
    %c0_i32_2 = arith.constant 0 : i32
    return %c0_i32, %c0_i32_0, %c0_i32_1 : i32, i32, i32
  }
  func.func @transform_3(%arg0: i32) -> (i32, i32) {
    %c0_i32 = arith.constant 0 : i32
    %c0_i32_0 = arith.constant 0 : i32
    %c0_i32_1 = arith.constant 0 : i32
    return %c0_i32, %c0_i32_0 : i32, i32
  }
  func.func @transform_4(%arg0: i32) -> (i32, i32, i32) {
    %c0_i32 = arith.constant 0 : i32
    %c0_i32_0 = arith.constant 0 : i32
    %c0_i32_1 = arith.constant 0 : i32
    %c0_i32_2 = arith.constant 0 : i32
    return %c0_i32, %c0_i32_0, %c0_i32_1 : i32, i32, i32
  }
  func.func @transform_5(%arg0: i32) -> (i32, i32, i32) {
    %c0_i32 = arith.constant 0 : i32
    %c0_i32_0 = arith.constant 0 : i32
    %c0_i32_1 = arith.constant 0 : i32
    %c0_i32_2 = arith.constant 0 : i32
    return %c0_i32, %c0_i32_0, %c0_i32_1 : i32, i32, i32
  }
}

</mosaic_0001>

<llo_original>
// kernel: ffc_forward.3
$region0: #{ffc_forward.3}
  #allocation0 [shape = 'u32[]', space=smem, size = 0x4, offset = 0x4, fixed_abs, tag = 'smem constant byte address 0x4 - core index']
  #allocation1 [shape = 'u32[144,128]{1,0:T(1,128)}', space=vmem, size = 0x12000, scoped, tag = 'internal scratch']
  %s0 = inlined_call_operand.vmem [shape: f32[2,8,256], index: 0, kind: input, shape index: {}]
  %s1 = inlined_call_operand.vmem [shape: f32[2,8,256], index: 1, kind: input, shape index: {}]
  %s2 = inlined_call_operand.vmem [shape: f32[8,8], index: 2, kind: input, shape index: {}]
  %s3 = inlined_call_operand.vmem [shape: f32[8,8], index: 3, kind: input, shape index: {}]
  %s4 = inlined_call_operand.vmem [shape: f32[8,8], index: 4, kind: input, shape index: {}]
  %s5 = inlined_call_operand.vmem [shape: f32[4,8], index: 5, kind: input, shape index: {}]
  %s6 = inlined_call_operand.vmem [shape: f32[4,1], index: 6, kind: input, shape index: {}]
  %s7 = inlined_call_operand.vmem [shape: f32[2,8,256], index: 7, kind: output, shape index: {0}]
  %s8 = inlined_call_operand.vmem [shape: f32[2,8,256], index: 8, kind: output, shape index: {1}]
  %s9 = inlined_call_operand.vmem [shape: f32[2,4,256], index: 9, kind: output, shape index: {2}]
  %10 = xla_tuple %s7, %s8, %s9
  %s11 = sld [smem:[#allocation0]]
  $region54: #{ffc_forward.3} parent=0
    _
  %s13 = ssub.s32 1, %s11
  %s14 = scalar_select 0, %s13, %s11
  // Predicated region
  $region2: #{ffc_forward.3} parent=0 // pred_check
    _
  $region3: #{ffc_forward.3} parent=0 // pred_check_branch
    %16 = sbr.rel (0) target = $region5
  $region4: #{ffc_forward.3} parent=0 // pred_region
    _
  $region5: #{ffc_forward.3} parent=0 // pred_fallthru
    _
  // Predicated region
  $region6: #{ffc_forward.3} parent=0 // pred_check
    _
  $region7: #{ffc_forward.3} parent=0 // pred_check_branch
    %18 = sbr.rel (0) target = $region9
  $region8: #{ffc_forward.3} parent=0 // pred_region
    _
  $region9: #{ffc_forward.3} parent=0 // pred_fallthru
    _
  // Predicated region
  $region10: #{ffc_forward.3} parent=0 // pred_check
    _
  $region11: #{ffc_forward.3} parent=0 // pred_check_branch
    %20 = sbr.rel (0) target = $region13
  $region12: #{ffc_forward.3} parent=0 // pred_region
    _
  $region13: #{ffc_forward.3} parent=0 // pred_fallthru
    _
  // Predicated region
  $region14: #{ffc_forward.3} parent=0 // pred_check
    _
  $region15: #{ffc_forward.3} parent=0 // pred_check_branch
    %22 = sbr.rel (0) target = $region17
  $region16: #{ffc_forward.3} parent=0 // pred_region
    _
  $region17: #{ffc_forward.3} parent=0 // pred_fallthru
    _
  // Predicated region
  $region18: #{ffc_forward.3} parent=0 // pred_check
    _
  $region19: #{ffc_forward.3} parent=0 // pred_check_branch
    %24 = sbr.rel (0) target = $region21
  $region20: #{ffc_forward.3} parent=0 // pred_region
    _
  $region21: #{ffc_forward.3} parent=0 // pred_fallthru
    _
  // Predicated region
  $region22: #{ffc_forward.3} parent=0 // pred_check
    _
  $region23: #{ffc_forward.3} parent=0 // pred_check_branch
    %26 = sbr.rel (0) target = $region25
  $region24: #{ffc_forward.3} parent=0 // pred_region
    _
  $region25: #{ffc_forward.3} parent=0 // pred_fallthru
    _
  // Predicated region
  $region26: #{ffc_forward.3} parent=0 // pred_check
    _
  $region27: #{ffc_forward.3} parent=0 // pred_check_branch
    %28 = sbr.rel (0) target = $region29
  $region28: #{ffc_forward.3} parent=0 // pred_region
    _
  $region29: #{ffc_forward.3} parent=0 // pred_fallthru
    _
  %v29 = vld [vmem:[%s2] sm:$0xff]
  %v30 = vld [vmem:[%s3] sm:$0xff]
  %v31 = vld [vmem:[%s4] sm:$0xff]
  %v32 = vld [vmem:[%s5] sm:$0xf]
  %v33 = vld [vmem:[%s6] sm:$0xf]
  %v34 = vld [vmem:[%s0] sm:$0xff]
  %v35 = vld [vmem:[%s0 + $0x8] sm:$0xff]
  %v36 = vld [vmem:[%s1] sm:$0xff]
  %v37 = vld [vmem:[%s1 + $0x8] sm:$0xff]
  %vm38 = vcmask 64512
  %v40 = vsel %vm38, %v30, 0
  %42 = vmatprep.subr.mxu0 %v37
  %43 = vmatpush1.msra.mxu0 %v36
  %44 = vmatprep.subr.mxu0 0.0
  %45 = vmatpush1.msra.mxu0 0.0
  %46 = vmatprep.subr.mxu0 0.0
  %47 = vmatpush1.msra.mxu0 0.0
  %48 = vmatprep.subr.mxu0 0.0
  %49 = vmatpush1.msra.mxu0 0.0
  %50 = vmatprep.subr.mxu0 0.0
  %51 = vmatpush1.msra.mxu0 0.0
  %52 = vmatprep.subr.mxu0 0.0
  %53 = vmatpush1.msra.mxu0 0.0
  %54 = vmatprep.subr.mxu0 0.0
  %55 = vmatpush1.msra.mxu0 0.0
  %56 = vmatprep.subr.mxu0 0.0
  %57 = vmatpush1.msra.mxu0 0.0
  %58 = vmatprep.subr.mxu0 0.0
  %59 = vmatpush1.msra.mxu0 0.0
  %60 = vmatprep.subr.mxu0 0.0
  %61 = vmatpush1.msra.mxu0 0.0
  %62 = vmatprep.subr.mxu0 0.0
  %63 = vmatpush1.msra.mxu0 0.0
  %64 = vmatprep.subr.mxu0 0.0
  %65 = vmatpush1.msra.mxu0 0.0
  %66 = vmatprep.subr.mxu0 0.0
  %67 = vmatpush1.msra.mxu0 0.0
  %68 = vmatprep.subr.mxu0 0.0
  %69 = vmatpush1.msra.mxu0 0.0
  %70 = vmatprep.subr.mxu0 0.0
  %71 = vmatpush1.msra.mxu0 0.0
  %72 = vmatprep.subr.mxu0 0.0
  %73 = vmatpush1.msra.mxu0 0.0
  %74 = vmatprep.subr.mxu0 0.0
  %75 = vmatpush1.msra.mxu0 0.0
  %76 = vmatprep.subr.mxu0 0.0
  %77 = vmatpush1.msra.mxu0 0.0
  %78 = vmatprep.subr.mxu0 0.0
  %79 = vmatpush1.msra.mxu0 0.0
  %80 = vmatprep.subr.mxu0 0.0
  %81 = vmatpush1.msra.mxu0 0.0
  %82 = vmatprep.subr.mxu0 0.0
  %83 = vmatpush1.msra.mxu0 0.0
  %84 = vmatprep.subr.mxu0 0.0
  %85 = vmatpush1.msra.mxu0 0.0
  %86 = vmatprep.subr.mxu0 0.0
  %87 = vmatpush1.msra.mxu0 0.0
  %88 = vmatprep.subr.mxu0 0.0
  %89 = vmatpush1.msra.mxu0 0.0
  %90 = vmatprep.subr.mxu0 0.0
  %91 = vmatpush1.msra.mxu0 0.0
  %92 = vmatprep.subr.mxu0 0.0
  %93 = vmatpush1.msra.mxu0 0.0
  %94 = vmatprep.subr.mxu0 0.0
  %95 = vmatpush1.msra.mxu0 0.0
  %96 = vmatprep.subr.mxu0 0.0
  %97 = vmatpush1.msra.mxu0 0.0
  %98 = vmatprep.subr.mxu0 0.0
  %99 = vmatpush1.msra.mxu0 0.0
  %100 = vmatprep.subr.mxu0 0.0
  %101 = vmatpush1.msra.mxu0 0.0
  %102 = vmatprep.subr.mxu0 0.0
  %103 = vmatpush1.msra.mxu0 0.0
  %104 = vmatprep.subr.mxu0 0.0
  %105 = vmatpush1.msra.mxu0 0.0
  %106 = vmatprep.mubr.f32.mxu0 0.0
  %107 = vmatmul.mubr.f32.gmra.mrb[0].mxu0 %v40
  %v108 = vpop.f32.mrb[0].mxu0
  %v109 = vadd.f32 0.0, %v108
  %v110 = vpop.f32.mrb[0].mxu0
  %v111 = vadd.f32 0.0, %v110
  %112 = vdwg.mxu0
  %v114 = vsel %vm38, %v29, 0
  %116 = vmatprep.subr.mxu0 %v35
  %117 = vmatpush1.msra.mxu0 %v34
  %118 = vmatprep.subr.mxu0 0.0
  %119 = vmatpush1.msra.mxu0 0.0
  %120 = vmatprep.subr.mxu0 0.0
  %121 = vmatpush1.msra.mxu0 0.0
  %122 = vmatprep.subr.mxu0 0.0
  %123 = vmatpush1.msra.mxu0 0.0
  %124 = vmatprep.subr.mxu0 0.0
  %125 = vmatpush1.msra.mxu0 0.0
  %126 = vmatprep.subr.mxu0 0.0
  %127 = vmatpush1.msra.mxu0 0.0
  %128 = vmatprep.subr.mxu0 0.0
  %129 = vmatpush1.msra.mxu0 0.0
  %130 = vmatprep.subr.mxu0 0.0
  %131 = vmatpush1.msra.mxu0 0.0
  %132 = vmatprep.subr.mxu0 0.0
  %133 = vmatpush1.msra.mxu0 0.0
  %134 = vmatprep.subr.mxu0 0.0
  %135 = vmatpush1.msra.mxu0 0.0
  %136 = vmatprep.subr.mxu0 0.0
  %137 = vmatpush1.msra.mxu0 0.0
  %138 = vmatprep.subr.mxu0 0.0
  %139 = vmatpush1.msra.mxu0 0.0
  %140 = vmatprep.subr.mxu0 0.0
  %141 = vmatpush1.msra.mxu0 0.0
  %142 = vmatprep.subr.mxu0 0.0
  %143 = vmatpush1.msra.mxu0 0.0
  %144 = vmatprep.subr.mxu0 0.0
  %145 = vmatpush1.msra.mxu0 0.0
  %146 = vmatprep.subr.mxu0 0.0
  %147 = vmatpush1.msra.mxu0 0.0
  %148 = vmatprep.subr.mxu0 0.0
  %149 = vmatpush1.msra.mxu0 0.0
  %150 = vmatprep.subr.mxu0 0.0
  %151 = vmatpush1.msra.mxu0 0.0
  %152 = vmatprep.subr.mxu0 0.0
  %153 = vmatpush1.msra.mxu0 0.0
  %154 = vmatprep.subr.mxu0 0.0
  %155 = vmatpush1.msra.mxu0 0.0
  %156 = vmatprep.subr.mxu0 0.0
  %157 = vmatpush1.msra.mxu0 0.0
  %158 = vmatprep.subr.mxu0 0.0
  %159 = vmatpush1.msra.mxu0 0.0
  %160 = vmatprep.subr.mxu0 0.0
  %161 = vmatpush1.msra.mxu0 0.0
  %162 = vmatprep.subr.mxu0 0.0
  %163 = vmatpush1.msra.mxu0 0.0
  %164 = vmatprep.subr.mxu0 0.0
  %165 = vmatpush1.msra.mxu0 0.0
  %166 = vmatprep.subr.mxu0 0.0
  %167 = vmatpush1.msra.mxu0 0.0
  %168 = vmatprep.subr.mxu0 0.0
  %169 = vmatpush1.msra.mxu0 0.0
  %170 = vmatprep.subr.mxu0 0.0
  %171 = vmatpush1.msra.mxu0 0.0
  %172 = vmatprep.subr.mxu0 0.0
  %173 = vmatpush1.msra.mxu0 0.0
  %174 = vmatprep.subr.mxu0 0.0
  %175 = vmatpush1.msra.mxu0 0.0
  %176 = vmatprep.subr.mxu0 0.0
  %177 = vmatpush1.msra.mxu0 0.0
  %178 = vmatprep.subr.mxu0 0.0
  %179 = vmatpush1.msra.mxu0 0.0
  %180 = vmatprep.mubr.f32.mxu0 0.0
  %181 = vmatmul.mubr.f32.gmra.mrb[0].mxu0 %v114
  %v182 = vpop.f32.mrb[0].mxu0
  %v183 = vadd.f32 %v109, %v182
  %v184 = vpop.f32.mrb[0].mxu0
  %v185 = vadd.f32 %v111, %v184
  %186 = vdwg.mxu0
  %187 = vst [vmem:[%s7] sm:$0xff] %v183
  %188 = vst [vmem:[%s7 + $0x8] sm:$0xff] %v185
  %v190 = vsel %vm38, %v31, 0
  %192 = vmatprep.subr.mxu0 %v35
  %193 = vmatpush1.msra.mxu0 %v34
  %194 = vmatprep.subr.mxu0 0.0
  %195 = vmatpush1.msra.mxu0 0.0
  %196 = vmatprep.subr.mxu0 0.0
  %197 = vmatpush1.msra.mxu0 0.0
  %198 = vmatprep.subr.mxu0 0.0
  %199 = vmatpush1.msra.mxu0 0.0
  %200 = vmatprep.subr.mxu0 0.0
  %201 = vmatpush1.msra.mxu0 0.0
  %202 = vmatprep.subr.mxu0 0.0
  %203 = vmatpush1.msra.mxu0 0.0
  %204 = vmatprep.subr.mxu0 0.0
  %205 = vmatpush1.msra.mxu0 0.0
  %206 = vmatprep.subr.mxu0 0.0
  %207 = vmatpush1.msra.mxu0 0.0
  %208 = vmatprep.subr.mxu0 0.0
  %209 = vmatpush1.msra.mxu0 0.0
  %210 = vmatprep.subr.mxu0 0.0
  %211 = vmatpush1.msra.mxu0 0.0
  %212 = vmatprep.subr.mxu0 0.0
  %213 = vmatpush1.msra.mxu0 0.0
  %214 = vmatprep.subr.mxu0 0.0
  %215 = vmatpush1.msra.mxu0 0.0
  %216 = vmatprep.subr.mxu0 0.0
  %217 = vmatpush1.msra.mxu0 0.0
  %218 = vmatprep.subr.mxu0 0.0
  %219 = vmatpush1.msra.mxu0 0.0
  %220 = vmatprep.subr.mxu0 0.0
  %221 = vmatpush1.msra.mxu0 0.0
  %222 = vmatprep.subr.mxu0 0.0
  %223 = vmatpush1.msra.mxu0 0.0
  %224 = vmatprep.subr.mxu0 0.0
  %225 = vmatpush1.msra.mxu0 0.0
  %226 = vmatprep.subr.mxu0 0.0
  %227 = vmatpush1.msra.mxu0 0.0
  %228 = vmatprep.subr.mxu0 0.0
  %229 = vmatpush1.msra.mxu0 0.0
  %230 = vmatprep.subr.mxu0 0.0
  %231 = vmatpush1.msra.mxu0 0.0
  %232 = vmatprep.subr.mxu0 0.0
  %233 = vmatpush1.msra.mxu0 0.0
  %234 = vmatprep.subr.mxu0 0.0
  %235 = vmatpush1.msra.mxu0 0.0
  %236 = vmatprep.subr.mxu0 0.0
  %237 = vmatpush1.msra.mxu0 0.0
  %238 = vmatprep.subr.mxu0 0.0
  %239 = vmatpush1.msra.mxu0 0.0
  %240 = vmatprep.subr.mxu0 0.0
  %241 = vmatpush1.msra.mxu0 0.0
  %242 = vmatprep.subr.mxu0 0.0
  %243 = vmatpush1.msra.mxu0 0.0
  %244 = vmatprep.subr.mxu0 0.0
  %245 = vmatpush1.msra.mxu0 0.0
  %246 = vmatprep.subr.mxu0 0.0
  %247 = vmatpush1.msra.mxu0 0.0
  %248 = vmatprep.subr.mxu0 0.0
  %249 = vmatpush1.msra.mxu0 0.0
  %250 = vmatprep.subr.mxu0 0.0
  %251 = vmatpush1.msra.mxu0 0.0
  %252 = vmatprep.subr.mxu0 0.0
  %253 = vmatpush1.msra.mxu0 0.0
  %254 = vmatprep.subr.mxu0 0.0
  %255 = vmatpush1.msra.mxu0 0.0
  %256 = vmatprep.mubr.f32.mxu0 0.0
  %257 = vmatmul.mubr.f32.gmra.mrb[0].mxu0 %v190
  %v258 = vpop.f32.mrb[0].mxu0
  %v259 = vadd.f32 0.0, %v258
  %v260 = vpop.f32.mrb[0].mxu0
  %v261 = vadd.f32 0.0, %v260
  %262 = vdwg.mxu0
  %263 = vst [vmem:[%s8] sm:$0xff] %v259
  %264 = vst [vmem:[%s8 + $0x8] sm:$0xff] %v261
  %266 = vset.pattern.permute.xlu0 0
  %267 = vperm.xlu0 %266, %v33
  %v268 = vpop.permute.xlu0 %267
  %v271 = vsel %vm38, %v32, 0
  %273 = vmatprep.subr.mxu0 %v37
  %274 = vmatpush1.msra.mxu0 %v36
  %275 = vmatprep.subr.mxu0 0.0
  %276 = vmatpush1.msra.mxu0 0.0
  %277 = vmatprep.subr.mxu0 0.0
  %278 = vmatpush1.msra.mxu0 0.0
  %279 = vmatprep.subr.mxu0 0.0
  %280 = vmatpush1.msra.mxu0 0.0
  %281 = vmatprep.subr.mxu0 0.0
  %282 = vmatpush1.msra.mxu0 0.0
  %283 = vmatprep.subr.mxu0 0.0
  %284 = vmatpush1.msra.mxu0 0.0
  %285 = vmatprep.subr.mxu0 0.0
  %286 = vmatpush1.msra.mxu0 0.0
  %287 = vmatprep.subr.mxu0 0.0
  %288 = vmatpush1.msra.mxu0 0.0
  %289 = vmatprep.subr.mxu0 0.0
  %290 = vmatpush1.msra.mxu0 0.0
  %291 = vmatprep.subr.mxu0 0.0
  %292 = vmatpush1.msra.mxu0 0.0
  %293 = vmatprep.subr.mxu0 0.0
  %294 = vmatpush1.msra.mxu0 0.0
  %295 = vmatprep.subr.mxu0 0.0
  %296 = vmatpush1.msra.mxu0 0.0
  %297 = vmatprep.subr.mxu0 0.0
  %298 = vmatpush1.msra.mxu0 0.0
  %299 = vmatprep.subr.mxu0 0.0
  %300 = vmatpush1.msra.mxu0 0.0
  %301 = vmatprep.subr.mxu0 0.0
  %302 = vmatpush1.msra.mxu0 0.0
  %303 = vmatprep.subr.mxu0 0.0
  %304 = vmatpush1.msra.mxu0 0.0
  %305 = vmatprep.subr.mxu0 0.0
  %306 = vmatpush1.msra.mxu0 0.0
  %307 = vmatprep.subr.mxu0 0.0
  %308 = vmatpush1.msra.mxu0 0.0
  %309 = vmatprep.subr.mxu0 0.0
  %310 = vmatpush1.msra.mxu0 0.0
  %311 = vmatprep.subr.mxu0 0.0
  %312 = vmatpush1.msra.mxu0 0.0
  %313 = vmatprep.subr.mxu0 0.0
  %314 = vmatpush1.msra.mxu0 0.0
  %315 = vmatprep.subr.mxu0 0.0
  %316 = vmatpush1.msra.mxu0 0.0
  %317 = vmatprep.subr.mxu0 0.0
  %318 = vmatpush1.msra.mxu0 0.0
  %319 = vmatprep.subr.mxu0 0.0
  %320 = vmatpush1.msra.mxu0 0.0
  %321 = vmatprep.subr.mxu0 0.0
  %322 = vmatpush1.msra.mxu0 0.0
  %323 = vmatprep.subr.mxu0 0.0
  %324 = vmatpush1.msra.mxu0 0.0
  %325 = vmatprep.subr.mxu0 0.0
  %326 = vmatpush1.msra.mxu0 0.0
  %327 = vmatprep.subr.mxu0 0.0
  %328 = vmatpush1.msra.mxu0 0.0
  %329 = vmatprep.subr.mxu0 0.0
  %330 = vmatpush1.msra.mxu0 0.0
  %331 = vmatprep.subr.mxu0 0.0
  %332 = vmatpush1.msra.mxu0 0.0
  %333 = vmatprep.subr.mxu0 0.0
  %334 = vmatpush1.msra.mxu0 0.0
  %335 = vmatprep.subr.mxu0 0.0
  %336 = vmatpush1.msra.mxu0 0.0
  %337 = vmatprep.mubr.f32.mxu0 0.0
  %338 = vmatmul.mubr.f32.gmra.mrb[0].mxu0 %v271
  %v339 = vpop.f32.mrb[0].mxu0
  %v340 = vadd.f32 %v268, %v339
  %v341 = vpop.f32.mrb[0].mxu0
  %v342 = vadd.f32 %v268, %v341
  %343 = vdwg.mxu0
  %v344 = vmax.f32 %v340, 0.0
  %v345 = vmax.f32 %v342, 0.0
  %v348 = vcombine.low %v344, %v345
  %350 = vst [vmem:[%s9] sm:$0xff] %v348
  %s351 = scalar_lea.vmem %s0, 16
  %v352 = vld [vmem:[%s351] sm:$0xff]
  %v353 = vld [vmem:[%s351 + $0x8] sm:$0xff]
  %s354 = scalar_lea.vmem %s1, 16
  %v355 = vld [vmem:[%s354] sm:$0xff]
  %v356 = vld [vmem:[%s354 + $0x8] sm:$0xff]
  %357 = vmatprep.subr.mxu0 %v356
  %358 = vmatpush1.msra.mxu0 %v355
  %359 = vmatprep.subr.mxu0 0.0
  %360 = vmatpush1.msra.mxu0 0.0
  %361 = vmatprep.subr.mxu0 0.0
  %362 = vmatpush1.msra.mxu0 0.0
  %363 = vmatprep.subr.mxu0 0.0
  %364 = vmatpush1.msra.mxu0 0.0
  %365 = vmatprep.subr.mxu0 0.0
  %366 = vmatpush1.msra.mxu0 0.0
  %367 = vmatprep.subr.mxu0 0.0
  %368 = vmatpush1.msra.mxu0 0.0
  %369 = vmatprep.subr.mxu0 0.0
  %370 = vmatpush1.msra.mxu0 0.0
  %371 = vmatprep.subr.mxu0 0.0
  %372 = vmatpush1.msra.mxu0 0.0
  %373 = vmatprep.subr.mxu0 0.0
  %374 = vmatpush1.msra.mxu0 0.0
  %375 = vmatprep.subr.mxu0 0.0
  %376 = vmatpush1.msra.mxu0 0.0
  %377 = vmatprep.subr.mxu0 0.0
  %378 = vmatpush1.msra.mxu0 0.0
  %379 = vmatprep.subr.mxu0 0.0
  %380 = vmatpush1.msra.mxu0 0.0
  %381 = vmatprep.subr.mxu0 0.0
  %382 = vmatpush1.msra.mxu0 0.0
  %383 = vmatprep.subr.mxu0 0.0
  %384 = vmatpush1.msra.mxu0 0.0
  %385 = vmatprep.subr.mxu0 0.0
  %386 = vmatpush1.msra.mxu0 0.0
  %387 = vmatprep.subr.mxu0 0.0
  %388 = vmatpush1.msra.mxu0 0.0
  %389 = vmatprep.subr.mxu0 0.0
  %390 = vmatpush1.msra.mxu0 0.0
  %391 = vmatprep.subr.mxu0 0.0
  %392 = vmatpush1.msra.mxu0 0.0
  %393 = vmatprep.subr.mxu0 0.0
  %394 = vmatpush1.msra.mxu0 0.0
  %395 = vmatprep.subr.mxu0 0.0
  %396 = vmatpush1.msra.mxu0 0.0
  %397 = vmatprep.subr.mxu0 0.0
  %398 = vmatpush1.msra.mxu0 0.0
  %399 = vmatprep.subr.mxu0 0.0
  %400 = vmatpush1.msra.mxu0 0.0
  %401 = vmatprep.subr.mxu0 0.0
  %402 = vmatpush1.msra.mxu0 0.0
  %403 = vmatprep.subr.mxu0 0.0
  %404 = vmatpush1.msra.mxu0 0.0
  %405 = vmatprep.subr.mxu0 0.0
  %406 = vmatpush1.msra.mxu0 0.0
  %407 = vmatprep.subr.mxu0 0.0
  %408 = vmatpush1.msra.mxu0 0.0
  %409 = vmatprep.subr.mxu0 0.0
  %410 = vmatpush1.msra.mxu0 0.0
  %411 = vmatprep.subr.mxu0 0.0
  %412 = vmatpush1.msra.mxu0 0.0
  %413 = vmatprep.subr.mxu0 0.0
  %414 = vmatpush1.msra.mxu0 0.0
  %415 = vmatprep.subr.mxu0 0.0
  %416 = vmatpush1.msra.mxu0 0.0
  %417 = vmatprep.subr.mxu0 0.0
  %418 = vmatpush1.msra.mxu0 0.0
  %419 = vmatprep.subr.mxu0 0.0
  %420 = vmatpush1.msra.mxu0 0.0
  %421 = vmatprep.mubr.f32.mxu0 0.0
  %422 = vmatmul.mubr.f32.gmra.mrb[0].mxu0 %v40
  %v423 = vpop.f32.mrb[0].mxu0
  %v424 = vadd.f32 0.0, %v423
  %v425 = vpop.f32.mrb[0].mxu0
  %v426 = vadd.f32 0.0, %v425
  %427 = vdwg.mxu0
  %428 = vmatprep.subr.mxu0 %v353
  %429 = vmatpush1.msra.mxu0 %v352
  %430 = vmatprep.subr.mxu0 0.0
  %431 = vmatpush1.msra.mxu0 0.0
  %432 = vmatprep.subr.mxu0 0.0
  %433 = vmatpush1.msra.mxu0 0.0
  %434 = vmatprep.subr.mxu0 0.0
  %435 = vmatpush1.msra.mxu0 0.0
  %436 = vmatprep.subr.mxu0 0.0
  %437 = vmatpush1.msra.mxu0 0.0
  %438 = vmatprep.subr.mxu0 0.0
  %439 = vmatpush1.msra.mxu0 0.0
  %440 = vmatprep.subr.mxu0 0.0
  %441 = vmatpush1.msra.mxu0 0.0
  %442 = vmatprep.subr.mxu0 0.0
  %443 = vmatpush1.msra.mxu0 0.0
  %444 = vmatprep.subr.mxu0 0.0
  %445 = vmatpush1.msra.mxu0 0.0
  %446 = vmatprep.subr.mxu0 0.0
  %447 = vmatpush1.msra.mxu0 0.0
  %448 = vmatprep.subr.mxu0 0.0
  %449 = vmatpush1.msra.mxu0 0.0
  %450 = vmatprep.subr.mxu0 0.0
  %451 = vmatpush1.msra.mxu0 0.0
  %452 = vmatprep.subr.mxu0 0.0
  %453 = vmatpush1.msra.mxu0 0.0
  %454 = vmatprep.subr.mxu0 0.0
  %455 = vmatpush1.msra.mxu0 0.0
  %456 = vmatprep.subr.mxu0 0.0
  %457 = vmatpush1.msra.mxu0 0.0
  %458 = vmatprep.subr.mxu0 0.0
  %459 = vmatpush1.msra.mxu0 0.0
  %460 = vmatprep.subr.mxu0 0.0
  %461 = vmatpush1.msra.mxu0 0.0
  %462 = vmatprep.subr.mxu0 0.0
  %463 = vmatpush1.msra.mxu0 0.0
  %464 = vmatprep.subr.mxu0 0.0
  %465 = vmatpush1.msra.mxu0 0.0
  %466 = vmatprep.subr.mxu0 0.0
  %467 = vmatpush1.msra.mxu0 0.0
  %468 = vmatprep.subr.mxu0 0.0
  %469 = vmatpush1.msra.mxu0 0.0
  %470 = vmatprep.subr.mxu0 0.0
  %471 = vmatpush1.msra.mxu0 0.0
  %472 = vmatprep.subr.mxu0 0.0
  %473 = vmatpush1.msra.mxu0 0.0
  %474 = vmatprep.subr.mxu0 0.0
  %475 = vmatpush1.msra.mxu0 0.0
  %476 = vmatprep.subr.mxu0 0.0
  %477 = vmatpush1.msra.mxu0 0.0
  %478 = vmatprep.subr.mxu0 0.0
  %479 = vmatpush1.msra.mxu0 0.0
  %480 = vmatprep.subr.mxu0 0.0
  %481 = vmatpush1.msra.mxu0 0.0
  %482 = vmatprep.subr.mxu0 0.0
  %483 = vmatpush1.msra.mxu0 0.0
  %484 = vmatprep.subr.mxu0 0.0
  %485 = vmatpush1.msra.mxu0 0.0
  %486 = vmatprep.subr.mxu0 0.0
  %487 = vmatpush1.msra.mxu0 0.0
  %488 = vmatprep.subr.mxu0 0.0
  %489 = vmatpush1.msra.mxu0 0.0
  %490 = vmatprep.subr.mxu0 0.0
  %491 = vmatpush1.msra.mxu0 0.0
  %492 = vmatprep.mubr.f32.mxu0 0.0
  %493 = vmatmul.mubr.f32.gmra.mrb[0].mxu0 %v114
  %v494 = vpop.f32.mrb[0].mxu0
  %v495 = vadd.f32 %v424, %v494
  %v496 = vpop.f32.mrb[0].mxu0
  %v497 = vadd.f32 %v426, %v496
  %498 = vdwg.mxu0
  %s499 = scalar_lea.vmem %s7, 16
  %500 = vst [vmem:[%s499] sm:$0xff] %v495
  %501 = vst [vmem:[%s499 + $0x8] sm:$0xff] %v497
  %502 = vmatprep.subr.mxu0 %v353
  %503 = vmatpush1.msra.mxu0 %v352
  %504 = vmatprep.subr.mxu0 0.0
  %505 = vmatpush1.msra.mxu0 0.0
  %506 = vmatprep.subr.mxu0 0.0
  %507 = vmatpush1.msra.mxu0 0.0
  %508 = vmatprep.subr.mxu0 0.0
  %509 = vmatpush1.msra.mxu0 0.0
  %510 = vmatprep.subr.mxu0 0.0
  %511 = vmatpush1.msra.mxu0 0.0
  %512 = vmatprep.subr.mxu0 0.0
  %513 = vmatpush1.msra.mxu0 0.0
  %514 = vmatprep.subr.mxu0 0.0
  %515 = vmatpush1.msra.mxu0 0.0
  %516 = vmatprep.subr.mxu0 0.0
  %517 = vmatpush1.msra.mxu0 0.0
  %518 = vmatprep.subr.mxu0 0.0
  %519 = vmatpush1.msra.mxu0 0.0
  %520 = vmatprep.subr.mxu0 0.0
  %521 = vmatpush1.msra.mxu0 0.0
  %522 = vmatprep.subr.mxu0 0.0
  %523 = vmatpush1.msra.mxu0 0.0
  %524 = vmatprep.subr.mxu0 0.0
  %525 = vmatpush1.msra.mxu0 0.0
  %526 = vmatprep.subr.mxu0 0.0
  %527 = vmatpush1.msra.mxu0 0.0
  %528 = vmatprep.subr.mxu0 0.0
  %529 = vmatpush1.msra.mxu0 0.0
  %530 = vmatprep.subr.mxu0 0.0
  %531 = vmatpush1.msra.mxu0 0.0
  %532 = vmatprep.subr.mxu0 0.0
  %533 = vmatpush1.msra.mxu0 0.0
  %534 = vmatprep.subr.mxu0 0.0
  %535 = vmatpush1.msra.mxu0 0.0
  %536 = vmatprep.subr.mxu0 0.0
  %537 = vmatpush1.msra.mxu0 0.0
  %538 = vmatprep.subr.mxu0 0.0
  %539 = vmatpush1.msra.mxu0 0.0
  %540 = vmatprep.subr.mxu0 0.0
  %541 = vmatpush1.msra.mxu0 0.0
  %542 = vmatprep.subr.mxu0 0.0
  %543 = vmatpush1.msra.mxu0 0.0
  %544 = vmatprep.subr.mxu0 0.0
  %545 = vmatpush1.msra.mxu0 0.0
  %546 = vmatprep.subr.mxu0 0.0
  %547 = vmatpush1.msra.mxu0 0.0
  %548 = vmatprep.subr.mxu0 0.0
  %549 = vmatpush1.msra.mxu0 0.0
  %550 = vmatprep.subr.mxu0 0.0
  %551 = vmatpush1.msra.mxu0 0.0
  %552 = vmatprep.subr.mxu0 0.0
  %553 = vmatpush1.msra.mxu0 0.0
  %554 = vmatprep.subr.mxu0 0.0
  %555 = vmatpush1.msra.mxu0 0.0
  %556 = vmatprep.subr.mxu0 0.0
  %557 = vmatpush1.msra.mxu0 0.0
  %558 = vmatprep.subr.mxu0 0.0
  %559 = vmatpush1.msra.mxu0 0.0
  %560 = vmatprep.subr.mxu0 0.0
  %561 = vmatpush1.msra.mxu0 0.0
  %562 = vmatprep.subr.mxu0 0.0
  %563 = vmatpush1.msra.mxu0 0.0
  %564 = vmatprep.subr.mxu0 0.0
  %565 = vmatpush1.msra.mxu0 0.0
  %566 = vmatprep.mubr.f32.mxu0 0.0
  %567 = vmatmul.mubr.f32.gmra.mrb[0].mxu0 %v190
  %v568 = vpop.f32.mrb[0].mxu0
  %v569 = vadd.f32 0.0, %v568
  %v570 = vpop.f32.mrb[0].mxu0
  %v571 = vadd.f32 0.0, %v570
  %572 = vdwg.mxu0
  %s573 = scalar_lea.vmem %s8, 16
  %574 = vst [vmem:[%s573] sm:$0xff] %v569
  %575 = vst [vmem:[%s573 + $0x8] sm:$0xff] %v571
  %576 = vmatprep.subr.mxu0 %v356
  %577 = vmatpush1.msra.mxu0 %v355
  %578 = vmatprep.subr.mxu0 0.0
  %579 = vmatpush1.msra.mxu0 0.0
  %580 = vmatprep.subr.mxu0 0.0
  %581 = vmatpush1.msra.mxu0 0.0
  %582 = vmatprep.subr.mxu0 0.0
  %583 = vmatpush1.msra.mxu0 0.0
  %584 = vmatprep.subr.mxu0 0.0
  %585 = vmatpush1.msra.mxu0 0.0
  %586 = vmatprep.subr.mxu0 0.0
  %587 = vmatpush1.msra.mxu0 0.0
  %588 = vmatprep.subr.mxu0 0.0
  %589 = vmatpush1.msra.mxu0 0.0
  %590 = vmatprep.subr.mxu0 0.0
  %591 = vmatpush1.msra.mxu0 0.0
  %592 = vmatprep.subr.mxu0 0.0
  %593 = vmatpush1.msra.mxu0 0.0
  %594 = vmatprep.subr.mxu0 0.0
  %595 = vmatpush1.msra.mxu0 0.0
  %596 = vmatprep.subr.mxu0 0.0
  %597 = vmatpush1.msra.mxu0 0.0
  %598 = vmatprep.subr.mxu0 0.0
  %599 = vmatpush1.msra.mxu0 0.0
  %600 = vmatprep.subr.mxu0 0.0
  %601 = vmatpush1.msra.mxu0 0.0
  %602 = vmatprep.subr.mxu0 0.0
  %603 = vmatpush1.msra.mxu0 0.0
  %604 = vmatprep.subr.mxu0 0.0
  %605 = vmatpush1.msra.mxu0 0.0
  %606 = vmatprep.subr.mxu0 0.0
  %607 = vmatpush1.msra.mxu0 0.0
  %608 = vmatprep.subr.mxu0 0.0
  %609 = vmatpush1.msra.mxu0 0.0
  %610 = vmatprep.subr.mxu0 0.0
  %611 = vmatpush1.msra.mxu0 0.0
  %612 = vmatprep.subr.mxu0 0.0
  %613 = vmatpush1.msra.mxu0 0.0
  %614 = vmatprep.subr.mxu0 0.0
  %615 = vmatpush1.msra.mxu0 0.0
  %616 = vmatprep.subr.mxu0 0.0
  %617 = vmatpush1.msra.mxu0 0.0
  %618 = vmatprep.subr.mxu0 0.0
  %619 = vmatpush1.msra.mxu0 0.0
  %620 = vmatprep.subr.mxu0 0.0
  %621 = vmatpush1.msra.mxu0 0.0
  %622 = vmatprep.subr.mxu0 0.0
  %623 = vmatpush1.msra.mxu0 0.0
  %624 = vmatprep.subr.mxu0 0.0
  %625 = vmatpush1.msra.mxu0 0.0
  %626 = vmatprep.subr.mxu0 0.0
  %627 = vmatpush1.msra.mxu0 0.0
  %628 = vmatprep.subr.mxu0 0.0
  %629 = vmatpush1.msra.mxu0 0.0
  %630 = vmatprep.subr.mxu0 0.0
  %631 = vmatpush1.msra.mxu0 0.0
  %632 = vmatprep.subr.mxu0 0.0
  %633 = vmatpush1.msra.mxu0 0.0
  %634 = vmatprep.subr.mxu0 0.0
  %635 = vmatpush1.msra.mxu0 0.0
  %636 = vmatprep.subr.mxu0 0.0
  %637 = vmatpush1.msra.mxu0 0.0
  %638 = vmatprep.subr.mxu0 0.0
  %639 = vmatpush1.msra.mxu0 0.0
  %640 = vmatprep.mubr.f32.mxu0 0.0
  %641 = vmatmul.mubr.f32.gmra.mrb[0].mxu0 %v271
  %v642 = vpop.f32.mrb[0].mxu0
  %v643 = vadd.f32 %v268, %v642
  %v644 = vpop.f32.mrb[0].mxu0
  %v645 = vadd.f32 %v268, %v644
  %646 = vdwg.mxu0
  %v647 = vmax.f32 %v643, 0.0
  %v648 = vmax.f32 %v645, 0.0
  %v651 = vcombine.low %v647, %v648
  %s653 = scalar_lea.vmem %s9, 8
  %654 = vst [vmem:[%s653] sm:$0xff] %v651
  // Predicated region
  $region30: #{ffc_forward.3} parent=0 // pred_check
    _
  $region31: #{ffc_forward.3} parent=0 // pred_check_branch
    %656 = sbr.rel (0) target = $region33
  $region32: #{ffc_forward.3} parent=0 // pred_region
    _
  $region33: #{ffc_forward.3} parent=0 // pred_fallthru
    _
  // Predicated region
  $region34: #{ffc_forward.3} parent=0 // pred_check
    _
  $region35: #{ffc_forward.3} parent=0 // pred_check_branch
    %658 = sbr.rel (0) target = $region37
  $region36: #{ffc_forward.3} parent=0 // pred_region
    _
  $region37: #{ffc_forward.3} parent=0 // pred_fallthru
    _
  // Predicated region
  $region38: #{ffc_forward.3} parent=0 // pred_check
    _
  $region39: #{ffc_forward.3} parent=0 // pred_check_branch
    %660 = sbr.rel (0) target = $region41
  $region40: #{ffc_forward.3} parent=0 // pred_region
    _
  $region41: #{ffc_forward.3} parent=0 // pred_fallthru
    _
  // Predicated region
  $region42: #{ffc_forward.3} parent=0 // pred_check
    _
  $region43: #{ffc_forward.3} parent=0 // pred_check_branch
    %662 = sbr.rel (0) target = $region45
  $region44: #{ffc_forward.3} parent=0 // pred_region
    _
  $region45: #{ffc_forward.3} parent=0 // pred_fallthru
    _
  // Predicated region
  $region46: #{ffc_forward.3} parent=0 // pred_check
    _
  $region47: #{ffc_forward.3} parent=0 // pred_check_branch
    %664 = sbr.rel (0) target = $region49
  $region48: #{ffc_forward.3} parent=0 // pred_region
    _
  $region49: #{ffc_forward.3} parent=0 // pred_fallthru
    _
  // Predicated region
  $region50: #{ffc_forward.3} parent=0 // pred_check
    _
  $region51: #{ffc_forward.3} parent=0 // pred_check_branch
    %666 = sbr.rel (0) target = $region53
  $region52: #{ffc_forward.3} parent=0 // pred_region
    _
  $region53: #{ffc_forward.3} parent=0 // pred_fallthru
    _

// kernel: reverse.1
$region0: #{reverse.1}
  %s0 = inlined_call_operand.vmem [shape: f32[2,4,8,3], index: 0, kind: input, shape index: {}]
  %s1 = inlined_call_operand.vmem [shape: f32[2,4,8,3], index: 1, kind: output, shape index: {}]
  $region1: #{reverse.1} parent=0
    #allocation0 [shape = 'u8[65536]{0}', space=vmem, size = 0x10000, scoped, tag = 'operand span for operand 0']
    #allocation1 [shape = 'u8[32768]{0}', space=vmem, size = 0x8000, scoped, tag = 'packed  for operand 0']
    #allocation2 [shape = 'u8[32768]{0}', space=vmem, size = 0x8000, scoped, tag = 'operand span for operand 1']
    #allocation3 [shape = 'u8[16384]{0}', space=vmem, size = 0x4000, scoped, tag = 'packed  for operand 1']
    %s2 = scalar_lea.vmem [#allocation1], 4
    // Predicated region
    $region2: #{reverse.1} parent=1 // pred_check
      _
    $region3: #{reverse.1} parent=1 // pred_check_branch
      %4 = sbr.rel (0) target = $region5
    $region4: #{reverse.1} parent=1 // pred_region
      // Predicated region
      $region6: #{reverse.1} parent=4 // pred_check
        _
      $region7: #{reverse.1} parent=4 // pred_check_branch
        %6 = sbr.rel target = $region9
      $region8: #{reverse.1} parent=4 // pred_region
        // Predicated region
        $region21: #{reverse.1} parent=8 // pred_check
          _
        $region22: #{reverse.1} parent=8 // pred_check_branch
          %35 = sbr.rel (0) target = $region24
        $region23: #{reverse.1} parent=8 // pred_region
          loop: start=0, step=1, limit=1
          $region25: #{reverse.1} parent=23 // loop_pre_header
            _
          $region26: #{reverse.1} parent=23 // loop_header
            %s37 = sphi 0, %s41
            %p38 = scmp.ge.s32.totalorder %s37, 1
            %s42 = sphi %s0, %s0
            %s43 = sphi %s2, %s2
          $region27: #{reverse.1} parent=23 // loop_header_branch
            %40 = sbr.rel (%p38) target = $region31
          $region28: #{reverse.1} parent=23 // loop_body
            _
          $region29: #{reverse.1} parent=23 // loop_footer
            %s41 = sadd.s32 1, %s37
          $region30: #{reverse.1} parent=23 // loop_footer_branch
            %36 = sbr.rel target = $region26
          $region31: #{reverse.1} parent=23 // loop_exit
            _
          loop: start=0, step=1, limit=1
          $region32: #{reverse.1} parent=23 // loop_pre_header
            _
          $region33: #{reverse.1} parent=23 // loop_header
            %s46 = sphi 0, %s50
            %p47 = scmp.ge.s32.totalorder %s46, 1
            %s51 = sphi %s0, %s0
            %s52 = sphi %s2, %s2
          $region34: #{reverse.1} parent=23 // loop_header_branch
            %49 = sbr.rel (%p47) target = $region38
          $region35: #{reverse.1} parent=23 // loop_body
            %v53 = vld [vmem:[%s51] sm:$0xf]
            %54 = vst [vmem:[%s52] sm:$0xf] %v53
            %v55 = vld [vmem:[%s51 + $0x4] sm:$0xf]
            %56 = vst [vmem:[%s52 + $0x8] sm:$0xf] %v55
            %v57 = vld [vmem:[%s51 + $0x8] sm:$0xf]
            %58 = vst [vmem:[%s52 + $0x10] sm:$0xf] %v57
            %v59 = vld [vmem:[%s51 + $0xc] sm:$0xf]
            %60 = vst [vmem:[%s52 + $0x18] sm:$0xf] %v59
            %v61 = vld [vmem:[%s51 + $0x10] sm:$0xf]
            %62 = vst [vmem:[%s52 + $0x20] sm:$0xf] %v61
            %v63 = vld [vmem:[%s51 + $0x14] sm:$0xf]
            %64 = vst [vmem:[%s52 + $0x28] sm:$0xf] %v63
            %v65 = vld [vmem:[%s51 + $0x18] sm:$0xf]
            %66 = vst [vmem:[%s52 + $0x30] sm:$0xf] %v65
            %v67 = vld [vmem:[%s51 + $0x1c] sm:$0xf]
            %68 = vst [vmem:[%s52 + $0x38] sm:$0xf] %v67
          $region36: #{reverse.1} parent=23 // loop_footer
            %s50 = sadd.s32 1, %s46
          $region37: #{reverse.1} parent=23 // loop_footer_branch
            %45 = sbr.rel target = $region33
          $region38: #{reverse.1} parent=23 // loop_exit
            _
        $region24: #{reverse.1} parent=8 // pred_fallthru
          _
      $region9: #{reverse.1} parent=4 // pred_fallthru
        _
      // Predicated region
      $region10: #{reverse.1} parent=4 // pred_check
        _
      $region11: #{reverse.1} parent=4 // pred_check_branch
        %8 = sbr.rel (0) target = $region13
      $region12: #{reverse.1} parent=4 // pred_region
        loop: start=0, step=1, limit=1
        $region14: #{reverse.1} parent=12 // loop_pre_header
          _
        $region15: #{reverse.1} parent=12 // loop_header
          %s11 = sphi 0, %s15
          %p12 = scmp.ge.s32.totalorder %s11, 1
          %s16 = sphi %s0, %s0
          %s17 = sphi %s2, %s2
        $region16: #{reverse.1} parent=12 // loop_header_branch
          %14 = sbr.rel (%p12) target = $region20
        $region17: #{reverse.1} parent=12 // loop_body
          %v18 = vld [vmem:[%s16] sm:$0xf]
          %19 = vst [vmem:[%s17] sm:$0xf] %v18
          %v20 = vld [vmem:[%s16 + $0x4] sm:$0xf]
          %21 = vst [vmem:[%s17 + $0x8] sm:$0xf] %v20
          %v22 = vld [vmem:[%s16 + $0x8] sm:$0xf]
          %23 = vst [vmem:[%s17 + $0x10] sm:$0xf] %v22
          %v24 = vld [vmem:[%s16 + $0xc] sm:$0xf]
          %25 = vst [vmem:[%s17 + $0x18] sm:$0xf] %v24
          %v26 = vld [vmem:[%s16 + $0x10] sm:$0xf]
          %27 = vst [vmem:[%s17 + $0x20] sm:$0xf] %v26
          %v28 = vld [vmem:[%s16 + $0x14] sm:$0xf]
          %29 = vst [vmem:[%s17 + $0x28] sm:$0xf] %v28
          %v30 = vld [vmem:[%s16 + $0x18] sm:$0xf]
          %31 = vst [vmem:[%s17 + $0x30] sm:$0xf] %v30
          %v32 = vld [vmem:[%s16 + $0x1c] sm:$0xf]
          %33 = vst [vmem:[%s17 + $0x38] sm:$0xf] %v32
        $region18: #{reverse.1} parent=12 // loop_footer
          %s15 = sadd.s32 1, %s11
        $region19: #{reverse.1} parent=12 // loop_footer_branch
          %10 = sbr.rel target = $region15
        $region20: #{reverse.1} parent=12 // loop_exit
          _
      $region13: #{reverse.1} parent=4 // pred_fallthru
        _
    $region5: #{reverse.1} parent=1 // pred_fallthru
      _
    %69 = vnop
    %s71 = sshllo.u32 0, 4
    %s72 = smul.addr 4, 15
    %s73 = scalar_lea.vmem [#allocation1], %s72
    %v74 = vld [vmem:[%s73] sm:%s71]
    %s75 = scalar_lea.vmem [#allocation0], 120
    %76 = vst [vmem:[%s75] sm:%s71] %v74
    %s77 = smul.addr 4, 14
    %s78 = scalar_lea.vmem [#allocation1], %s77
    %v79 = vld [vmem:[%s78] sm:%s71]
    %s80 = scalar_lea.vmem [#allocation0], 112
    %81 = vst [vmem:[%s80] sm:%s71] %v79
    %s82 = smul.addr 4, 13
    %s83 = scalar_lea.vmem [#allocation1], %s82
    %v84 = vld [vmem:[%s83] sm:%s71]
    %s85 = scalar_lea.vmem [#allocation0], 104
    %86 = vst [vmem:[%s85] sm:%s71] %v84
    %s87 = smul.addr 4, 12
    %s88 = scalar_lea.vmem [#allocation1], %s87
    %v89 = vld [vmem:[%s88] sm:%s71]
    %s90 = scalar_lea.vmem [#allocation0], 96
    %91 = vst [vmem:[%s90] sm:%s71] %v89
    %s92 = smul.addr 4, 11
    %s93 = scalar_lea.vmem [#allocation1], %s92
    %v94 = vld [vmem:[%s93] sm:%s71]
    %s95 = scalar_lea.vmem [#allocation0], 88
    %96 = vst [vmem:[%s95] sm:%s71] %v94
    %s97 = smul.addr 4, 10
    %s98 = scalar_lea.vmem [#allocation1], %s97
    %v99 = vld [vmem:[%s98] sm:%s71]
    %s100 = scalar_lea.vmem [#allocation0], 80
    %101 = vst [vmem:[%s100] sm:%s71] %v99
    %s102 = smul.addr 4, 9
    %s103 = scalar_lea.vmem [#allocation1], %s102
    %v104 = vld [vmem:[%s103] sm:%s71]
    %s105 = scalar_lea.vmem [#allocation0], 72
    %106 = vst [vmem:[%s105] sm:%s71] %v104
    %s107 = smul.addr 4, 8
    %s108 = scalar_lea.vmem [#allocation1], %s107
    %v109 = vld [vmem:[%s108] sm:%s71]
    %s110 = scalar_lea.vmem [#allocation0], 64
    %111 = vst [vmem:[%s110] sm:%s71] %v109
    %s112 = smul.addr 4, 7
    %s113 = scalar_lea.vmem [#allocation1], %s112
    %v114 = vld [vmem:[%s113] sm:%s71]
    %s115 = scalar_lea.vmem [#allocation0], 56
    %116 = vst [vmem:[%s115] sm:%s71] %v114
    %s117 = smul.addr 4, 6
    %s118 = scalar_lea.vmem [#allocation1], %s117
    %v119 = vld [vmem:[%s118] sm:%s71]
    %s120 = scalar_lea.vmem [#allocation0], 48
    %121 = vst [vmem:[%s120] sm:%s71] %v119
    %s122 = smul.addr 4, 5
    %s123 = scalar_lea.vmem [#allocation1], %s122
    %v124 = vld [vmem:[%s123] sm:%s71]
    %s125 = scalar_lea.vmem [#allocation0], 40
    %126 = vst [vmem:[%s125] sm:%s71] %v124
    %s127 = smul.addr 4, 4
    %s128 = scalar_lea.vmem [#allocation1], %s127
    %v129 = vld [vmem:[%s128] sm:%s71]
    %s130 = scalar_lea.vmem [#allocation0], 32
    %131 = vst [vmem:[%s130] sm:%s71] %v129
    %s132 = smul.addr 4, 3
    %s133 = scalar_lea.vmem [#allocation1], %s132
    %v134 = vld [vmem:[%s133] sm:%s71]
    %s135 = scalar_lea.vmem [#allocation0], 24
    %136 = vst [vmem:[%s135] sm:%s71] %v134
    %s137 = smul.addr 4, 2
    %s138 = scalar_lea.vmem [#allocation1], %s137
    %v139 = vld [vmem:[%s138] sm:%s71]
    %s140 = scalar_lea.vmem [#allocation0], 16
    %141 = vst [vmem:[%s140] sm:%s71] %v139
    %s142 = scalar_lea.vmem [#allocation1], 4
    %v143 = vld [vmem:[%s142] sm:%s71]
    %s144 = scalar_lea.vmem [#allocation0], 8
    %145 = vst [vmem:[%s144] sm:%s71] %v143
    %v146 = vld [vmem:[#allocation1] sm:%s71]
    %147 = vst [vmem:[#allocation0] sm:%s71] %v146
    %s148 = scalar_lea.vmem [#allocation0], 7
    %v149 = vld [vmem:[%s148] ss:$-1 sm:$0xff]
    %v150 = vrot.slane %v149, 5
    %151 = vst [vmem:[#allocation2] sm:$0xff] %v150
    %s152 = scalar_lea.vmem [#allocation0], 8
    %s153 = scalar_lea.vmem %s152, 7 [#allocation0]
    %v154 = vld [vmem:[%s153] ss:$-1 sm:$0xff]
    %v155 = vrot.slane %v154, 5
    %v156 = vlaneseq
    %v157 = vshrl.u32 %v156, 7
    %vm158 = vcmp.lt.s32.totalorder %v157, 3
    %159 = vst.msk [vmem:[#allocation2] sm:$0xff] %vm158, %v155
    %s160 = scalar_lea.vmem [#allocation2], 8
    %s161 = scalar_lea.vmem [#allocation0], 16
    %s162 = scalar_lea.vmem %s161, 7 [#allocation0]
    %v163 = vld [vmem:[%s162] ss:$-1 sm:$0xff]
    %v164 = vrot.slane %v163, 5
    %165 = vst [vmem:[%s160] sm:$0xff] %v164
    %s166 = scalar_lea.vmem %s161, 8 [#allocation0]
    %s167 = scalar_lea.vmem %s166, 7 [#allocation0]
    %v168 = vld [vmem:[%s167] ss:$-1 sm:$0xff]
    %v169 = vrot.slane %v168, 5
    %v170 = vlaneseq
    %v171 = vshrl.u32 %v170, 7
    %vm172 = vcmp.lt.s32.totalorder %v171, 3
    %173 = vst.msk [vmem:[%s160] sm:$0xff] %vm172, %v169
    %s174 = scalar_lea.vmem [#allocation2], 16
    %s175 = scalar_lea.vmem [#allocation0], 32
    %s176 = scalar_lea.vmem %s175, 7 [#allocation0]
    %v177 = vld [vmem:[%s176] ss:$-1 sm:$0xff]
    %v178 = vrot.slane %v177, 5
    %179 = vst [vmem:[%s174] sm:$0xff] %v178
    %s180 = scalar_lea.vmem %s175, 8 [#allocation0]
    %s181 = scalar_lea.vmem %s180, 7 [#allocation0]
    %v182 = vld [vmem:[%s181] ss:$-1 sm:$0xff]
    %v183 = vrot.slane %v182, 5
    %v184 = vlaneseq
    %v185 = vshrl.u32 %v184, 7
    %vm186 = vcmp.lt.s32.totalorder %v185, 3
    %187 = vst.msk [vmem:[%s174] sm:$0xff] %vm186, %v183
    %s188 = scalar_lea.vmem [#allocation2], 24
    %s189 = scalar_lea.vmem [#allocation0], 48
    %s190 = scalar_lea.vmem %s189, 7 [#allocation0]
    %v191 = vld [vmem:[%s190] ss:$-1 sm:$0xff]
    %v192 = vrot.slane %v191, 5
    %193 = vst [vmem:[%s188] sm:$0xff] %v192
    %s194 = scalar_lea.vmem %s189, 8 [#allocation0]
    %s195 = scalar_lea.vmem %s194, 7 [#allocation0]
    %v196 = vld [vmem:[%s195] ss:$-1 sm:$0xff]
    %v197 = vrot.slane %v196, 5
    %v198 = vlaneseq
    %v199 = vshrl.u32 %v198, 7
    %vm200 = vcmp.lt.s32.totalorder %v199, 3
    %201 = vst.msk [vmem:[%s188] sm:$0xff] %vm200, %v197
    %s202 = scalar_lea.vmem [#allocation2], 32
    %s203 = scalar_lea.vmem [#allocation0], 64
    %s204 = scalar_lea.vmem %s203, 7 [#allocation0]
    %v205 = vld [vmem:[%s204] ss:$-1 sm:$0xff]
    %v206 = vrot.slane %v205, 5
    %207 = vst [vmem:[%s202] sm:$0xff] %v206
    %s208 = scalar_lea.vmem %s203, 8 [#allocation0]
    %s209 = scalar_lea.vmem %s208, 7 [#allocation0]
    %v210 = vld [vmem:[%s209] ss:$-1 sm:$0xff]
    %v211 = vrot.slane %v210, 5
    %v212 = vlaneseq
    %v213 = vshrl.u32 %v212, 7
    %vm214 = vcmp.lt.s32.totalorder %v213, 3
    %215 = vst.msk [vmem:[%s202] sm:$0xff] %vm214, %v211
    %s216 = scalar_lea.vmem [#allocation2], 40
    %s217 = scalar_lea.vmem [#allocation0], 80
    %s218 = scalar_lea.vmem %s217, 7 [#allocation0]
    %v219 = vld [vmem:[%s218] ss:$-1 sm:$0xff]
    %v220 = vrot.slane %v219, 5
    %221 = vst [vmem:[%s216] sm:$0xff] %v220
    %s222 = scalar_lea.vmem %s217, 8 [#allocation0]
    %s223 = scalar_lea.vmem %s222, 7 [#allocation0]
    %v224 = vld [vmem:[%s223] ss:$-1 sm:$0xff]
    %v225 = vrot.slane %v224, 5
    %v226 = vlaneseq
    %v227 = vshrl.u32 %v226, 7
    %vm228 = vcmp.lt.s32.totalorder %v227, 3
    %229 = vst.msk [vmem:[%s216] sm:$0xff] %vm228, %v225
    %s230 = scalar_lea.vmem [#allocation2], 48
    %s231 = scalar_lea.vmem [#allocation0], 96
    %s232 = scalar_lea.vmem %s231, 7 [#allocation0]
    %v233 = vld [vmem:[%s232] ss:$-1 sm:$0xff]
    %v234 = vrot.slane %v233, 5
    %235 = vst [vmem:[%s230] sm:$0xff] %v234
    %s236 = scalar_lea.vmem %s231, 8 [#allocation0]
    %s237 = scalar_lea.vmem %s236, 7 [#allocation0]
    %v238 = vld [vmem:[%s237] ss:$-1 sm:$0xff]
    %v239 = vrot.slane %v238, 5
    %v240 = vlaneseq
    %v241 = vshrl.u32 %v240, 7
    %vm242 = vcmp.lt.s32.totalorder %v241, 3
    %243 = vst.msk [vmem:[%s230] sm:$0xff] %vm242, %v239
    %s244 = scalar_lea.vmem [#allocation2], 56
    %s245 = scalar_lea.vmem [#allocation0], 112
    %s246 = scalar_lea.vmem %s245, 7 [#allocation0]
    %v247 = vld [vmem:[%s246] ss:$-1 sm:$0xff]
    %v248 = vrot.slane %v247, 5
    %249 = vst [vmem:[%s244] sm:$0xff] %v248
    %s250 = scalar_lea.vmem %s245, 8 [#allocation0]
    %s251 = scalar_lea.vmem %s250, 7 [#allocation0]
    %v252 = vld [vmem:[%s251] ss:$-1 sm:$0xff]
    %v253 = vrot.slane %v252, 5
    %v254 = vlaneseq
    %v255 = vshrl.u32 %v254, 7
    %vm256 = vcmp.lt.s32.totalorder %v255, 3
    %257 = vst.msk [vmem:[%s244] sm:$0xff] %vm256, %v253
    %s259 = sshllo.u32 0, 4
    %v261 = vld [vmem:[#allocation2] sm:%s259]
    %s262 = sshllo.u32 0, 4
    %263 = vst [vmem:[#allocation3] sm:%s262] %v261
    %s264 = scalar_lea.vmem [#allocation2], 8
    %v265 = vld [vmem:[%s264] sm:%s259]
    %s266 = sshllo.u32 0, 4
    %s267 = scalar_lea.vmem [#allocation3], 4
    %268 = vst [vmem:[%s267] sm:%s266] %v265
    %s269 = scalar_lea.vmem [#allocation2], 16
    %v270 = vld [vmem:[%s269] sm:%s259]
    %s271 = sshllo.u32 0, 4
    %s272 = smul.addr 4, 2
    %s273 = scalar_lea.vmem [#allocation3], %s272
    %274 = vst [vmem:[%s273] sm:%s271] %v270
    %s275 = scalar_lea.vmem [#allocation2], 24
    %v276 = vld [vmem:[%s275] sm:%s259]
    %s277 = sshllo.u32 0, 4
    %s278 = smul.addr 4, 3
    %s279 = scalar_lea.vmem [#allocation3], %s278
    %280 = vst [vmem:[%s279] sm:%s277] %v276
    %s281 = scalar_lea.vmem [#allocation2], 32
    %v282 = vld [vmem:[%s281] sm:%s259]
    %s283 = sshllo.u32 0, 4
    %s284 = smul.addr 4, 4
    %s285 = scalar_lea.vmem [#allocation3], %s284
    %286 = vst [vmem:[%s285] sm:%s283] %v282
    %s287 = scalar_lea.vmem [#allocation2], 40
    %v288 = vld [vmem:[%s287] sm:%s259]
    %s289 = sshllo.u32 0, 4
    %s290 = smul.addr 4, 5
    %s291 = scalar_lea.vmem [#allocation3], %s290
    %292 = vst [vmem:[%s291] sm:%s289] %v288
    %s293 = scalar_lea.vmem [#allocation2], 48
    %v294 = vld [vmem:[%s293] sm:%s259]
    %s295 = sshllo.u32 0, 4
    %s296 = smul.addr 4, 6
    %s297 = scalar_lea.vmem [#allocation3], %s296
    %298 = vst [vmem:[%s297] sm:%s295] %v294
    %s299 = scalar_lea.vmem [#allocation2], 56
    %v300 = vld [vmem:[%s299] sm:%s259]
    %s301 = sshllo.u32 0, 4
    %s302 = smul.addr 4, 7
    %s303 = scalar_lea.vmem [#allocation3], %s302
    %304 = vst [vmem:[%s303] sm:%s301] %v300
    // Predicated region
    $region39: #{reverse.1} parent=1 // pred_check
      _
    $region40: #{reverse.1} parent=1 // pred_check_branch
      %306 = sbr.rel (0) target = $region42
    $region41: #{reverse.1} parent=1 // pred_region
      // Predicated region
      $region43: #{reverse.1} parent=41 // pred_check
        _
      $region44: #{reverse.1} parent=41 // pred_check_branch
        %308 = sbr.rel target = $region46
      $region45: #{reverse.1} parent=41 // pred_region
        // Predicated region
        $region58: #{reverse.1} parent=45 // pred_check
          _
        $region59: #{reverse.1} parent=45 // pred_check_branch
          %337 = sbr.rel (0) target = $region61
        $region60: #{reverse.1} parent=45 // pred_region
          loop: start=0, step=1, limit=1
          $region62: #{reverse.1} parent=60 // loop_pre_header
            _
          $region63: #{reverse.1} parent=60 // loop_header
            %s339 = sphi 0, %s343
            %p340 = scmp.ge.s32.totalorder %s339, 1
            %s344 = sphi [#allocation3], [#allocation3]
            %s345 = sphi %s1, %s1
          $region64: #{reverse.1} parent=60 // loop_header_branch
            %342 = sbr.rel (%p340) target = $region68
          $region65: #{reverse.1} parent=60 // loop_body
            _
          $region66: #{reverse.1} parent=60 // loop_footer
            %s343 = sadd.s32 1, %s339
          $region67: #{reverse.1} parent=60 // loop_footer_branch
            %338 = sbr.rel target = $region63
          $region68: #{reverse.1} parent=60 // loop_exit
            _
          loop: start=0, step=1, limit=1
          $region69: #{reverse.1} parent=60 // loop_pre_header
            _
          $region70: #{reverse.1} parent=60 // loop_header
            %s348 = sphi 0, %s352
            %p349 = scmp.ge.s32.totalorder %s348, 1
            %s353 = sphi [#allocation3], [#allocation3]
            %s354 = sphi %s1, %s1
          $region71: #{reverse.1} parent=60 // loop_header_branch
            %351 = sbr.rel (%p349) target = $region75
          $region72: #{reverse.1} parent=60 // loop_body
            %v355 = vld [vmem:[%s353] sm:$0xf]
            %356 = vst [vmem:[%s354] sm:$0xf] %v355
            %v357 = vld [vmem:[%s353 + $0x4] sm:$0xf]
            %358 = vst [vmem:[%s354 + $0x4] sm:$0xf] %v357
            %v359 = vld [vmem:[%s353 + $0x8] sm:$0xf]
            %360 = vst [vmem:[%s354 + $0x8] sm:$0xf] %v359
            %v361 = vld [vmem:[%s353 + $0xc] sm:$0xf]
            %362 = vst [vmem:[%s354 + $0xc] sm:$0xf] %v361
            %v363 = vld [vmem:[%s353 + $0x10] sm:$0xf]
            %364 = vst [vmem:[%s354 + $0x10] sm:$0xf] %v363
            %v365 = vld [vmem:[%s353 + $0x14] sm:$0xf]
            %366 = vst [vmem:[%s354 + $0x14] sm:$0xf] %v365
            %v367 = vld [vmem:[%s353 + $0x18] sm:$0xf]
            %368 = vst [vmem:[%s354 + $0x18] sm:$0xf] %v367
            %v369 = vld [vmem:[%s353 + $0x1c] sm:$0xf]
            %370 = vst [vmem:[%s354 + $0x1c] sm:$0xf] %v369
          $region73: #{reverse.1} parent=60 // loop_footer
            %s352 = sadd.s32 1, %s348
          $region74: #{reverse.1} parent=60 // loop_footer_branch
            %347 = sbr.rel target = $region70
          $region75: #{reverse.1} parent=60 // loop_exit
            _
        $region61: #{reverse.1} parent=45 // pred_fallthru
          _
      $region46: #{reverse.1} parent=41 // pred_fallthru
        _
      // Predicated region
      $region47: #{reverse.1} parent=41 // pred_check
        _
      $region48: #{reverse.1} parent=41 // pred_check_branch
        %310 = sbr.rel (0) target = $region50
      $region49: #{reverse.1} parent=41 // pred_region
        loop: start=0, step=1, limit=1
        $region51: #{reverse.1} parent=49 // loop_pre_header
          _
        $region52: #{reverse.1} parent=49 // loop_header
          %s313 = sphi 0, %s317
          %p314 = scmp.ge.s32.totalorder %s313, 1
          %s318 = sphi [#allocation3], [#allocation3]
          %s319 = sphi %s1, %s1
        $region53: #{reverse.1} parent=49 // loop_header_branch
          %316 = sbr.rel (%p314) target = $region57
        $region54: #{reverse.1} parent=49 // loop_body
          %v320 = vld [vmem:[%s318] sm:$0xf]
          %321 = vst [vmem:[%s319] sm:$0xf] %v320
          %v322 = vld [vmem:[%s318 + $0x4] sm:$0xf]
          %323 = vst [vmem:[%s319 + $0x4] sm:$0xf] %v322
          %v324 = vld [vmem:[%s318 + $0x8] sm:$0xf]
          %325 = vst [vmem:[%s319 + $0x8] sm:$0xf] %v324
          %v326 = vld [vmem:[%s318 + $0xc] sm:$0xf]
          %327 = vst [vmem:[%s319 + $0xc] sm:$0xf] %v326
          %v328 = vld [vmem:[%s318 + $0x10] sm:$0xf]
          %329 = vst [vmem:[%s319 + $0x10] sm:$0xf] %v328
          %v330 = vld [vmem:[%s318 + $0x14] sm:$0xf]
          %331 = vst [vmem:[%s319 + $0x14] sm:$0xf] %v330
          %v332 = vld [vmem:[%s318 + $0x18] sm:$0xf]
          %333 = vst [vmem:[%s319 + $0x18] sm:$0xf] %v332
          %v334 = vld [vmem:[%s318 + $0x1c] sm:$0xf]
          %335 = vst [vmem:[%s319 + $0x1c] sm:$0xf] %v334
        $region55: #{reverse.1} parent=49 // loop_footer
          %s317 = sadd.s32 1, %s313
        $region56: #{reverse.1} parent=49 // loop_footer_branch
          %312 = sbr.rel target = $region52
        $region57: #{reverse.1} parent=49 // loop_exit
          _
      $region50: #{reverse.1} parent=41 // pred_fallthru
        _
    $region42: #{reverse.1} parent=1 // pred_fallthru
      _
    %371 = vnop

// kernel: ffc_forward.4
$region0: #{ffc_forward.4}
  #allocation0 [shape = 'u32[]', space=smem, size = 0x4, offset = 0x4, fixed_abs, tag = 'smem constant byte address 0x4 - core index']
  #allocation1 [shape = 'u32[144,128]{1,0:T(1,128)}', space=vmem, size = 0x12000, scoped, tag = 'internal scratch']
  %s0 = inlined_call_operand.vmem [shape: f32[2,8,144], index: 0, kind: input, shape index: {}]
  %s1 = inlined_call_operand.vmem [shape: f32[2,8,40], index: 1, kind: input, shape index: {}]
  %s2 = inlined_call_operand.vmem [shape: f32[8,8], index: 2, kind: input, shape index: {}]
  %s3 = inlined_call_operand.vmem [shape: f32[8,1], index: 3, kind: input, shape index: {}]
  %s4 = inlined_call_operand.vmem [shape: f32[8,8], index: 4, kind: input, shape index: {}]
  %s5 = inlined_call_operand.vmem [shape: f32[8,1], index: 5, kind: input, shape index: {}]
  %s6 = inlined_call_operand.vmem [shape: f32[2,8,144], index: 6, kind: output, shape index: {0}]
  %s7 = inlined_call_operand.vmem [shape: f32[2,8,40], index: 7, kind: output, shape index: {1}]
  %8 = xla_tuple %s6, %s7
  %s9 = sld [smem:[#allocation0]]
  $region42: #{ffc_forward.4} parent=0
    _
  %s11 = ssub.s32 1, %s9
  %s12 = scalar_select 0, %s11, %s9
  // Predicated region
  $region2: #{ffc_forward.4} parent=0 // pred_check
    _
  $region3: #{ffc_forward.4} parent=0 // pred_check_branch
    %14 = sbr.rel (0) target = $region5
  $region4: #{ffc_forward.4} parent=0 // pred_region
    _
  $region5: #{ffc_forward.4} parent=0 // pred_fallthru
    _
  // Predicated region
  $region6: #{ffc_forward.4} parent=0 // pred_check
    _
  $region7: #{ffc_forward.4} parent=0 // pred_check_branch
    %16 = sbr.rel (0) target = $region9
  $region8: #{ffc_forward.4} parent=0 // pred_region
    _
  $region9: #{ffc_forward.4} parent=0 // pred_fallthru
    _
  // Predicated region
  $region10: #{ffc_forward.4} parent=0 // pred_check
    _
  $region11: #{ffc_forward.4} parent=0 // pred_check_branch
    %18 = sbr.rel (0) target = $region13
  $region12: #{ffc_forward.4} parent=0 // pred_region
    _
  $region13: #{ffc_forward.4} parent=0 // pred_fallthru
    _
  // Predicated region
  $region14: #{ffc_forward.4} parent=0 // pred_check
    _
  $region15: #{ffc_forward.4} parent=0 // pred_check_branch
    %20 = sbr.rel (0) target = $region17
  $region16: #{ffc_forward.4} parent=0 // pred_region
    _
  $region17: #{ffc_forward.4} parent=0 // pred_fallthru
    _
  // Predicated region
  $region18: #{ffc_forward.4} parent=0 // pred_check
    _
  $region19: #{ffc_forward.4} parent=0 // pred_check_branch
    %22 = sbr.rel (0) target = $region21
  $region20: #{ffc_forward.4} parent=0 // pred_region
    _
  $region21: #{ffc_forward.4} parent=0 // pred_fallthru
    _
  // Predicated region
  $region22: #{ffc_forward.4} parent=0 // pred_check
    _
  $region23: #{ffc_forward.4} parent=0 // pred_check_branch
    %24 = sbr.rel (0) target = $region25
  $region24: #{ffc_forward.4} parent=0 // pred_region
    _
  $region25: #{ffc_forward.4} parent=0 // pred_fallthru
    _
  %v25 = vld [vmem:[%s2] sm:$0xff]
  %v26 = vld [vmem:[%s3] sm:$0xff]
  %v27 = vld [vmem:[%s4] sm:$0xff]
  %v28 = vld [vmem:[%s5] sm:$0xff]
  %v29 = vld [vmem:[%s0] sm:$0xff]
  %v30 = vld [vmem:[%s0 + $0x8] sm:$0xff]
  %32 = vset.pattern.permute.xlu0 0
  %33 = vperm.xlu0 %32, %v26
  %v34 = vpop.permute.xlu0 %33
  %vm36 = vcmask 64512
  %v38 = vsel %vm36, %v25, 0
  %40 = vmatprep.subr.mxu0 %v30
  %41 = vmatpush1.msra.mxu0 %v29
  %42 = vmatprep.subr.mxu0 0.0
  %43 = vmatpush1.msra.mxu0 0.0
  %44 = vmatprep.subr.mxu0 0.0
  %45 = vmatpush1.msra.mxu0 0.0
  %46 = vmatprep.subr.mxu0 0.0
  %47 = vmatpush1.msra.mxu0 0.0
  %48 = vmatprep.subr.mxu0 0.0
  %49 = vmatpush1.msra.mxu0 0.0
  %50 = vmatprep.subr.mxu0 0.0
  %51 = vmatpush1.msra.mxu0 0.0
  %52 = vmatprep.subr.mxu0 0.0
  %53 = vmatpush1.msra.mxu0 0.0
  %54 = vmatprep.subr.mxu0 0.0
  %55 = vmatpush1.msra.mxu0 0.0
  %56 = vmatprep.subr.mxu0 0.0
  %57 = vmatpush1.msra.mxu0 0.0
  %58 = vmatprep.subr.mxu0 0.0
  %59 = vmatpush1.msra.mxu0 0.0
  %60 = vmatprep.subr.mxu0 0.0
  %61 = vmatpush1.msra.mxu0 0.0
  %62 = vmatprep.subr.mxu0 0.0
  %63 = vmatpush1.msra.mxu0 0.0
  %64 = vmatprep.subr.mxu0 0.0
  %65 = vmatpush1.msra.mxu0 0.0
  %66 = vmatprep.subr.mxu0 0.0
  %67 = vmatpush1.msra.mxu0 0.0
  %68 = vmatprep.subr.mxu0 0.0
  %69 = vmatpush1.msra.mxu0 0.0
  %70 = vmatprep.subr.mxu0 0.0
  %71 = vmatpush1.msra.mxu0 0.0
  %72 = vmatprep.subr.mxu0 0.0
  %73 = vmatpush1.msra.mxu0 0.0
  %74 = vmatprep.subr.mxu0 0.0
  %75 = vmatpush1.msra.mxu0 0.0
  %76 = vmatprep.subr.mxu0 0.0
  %77 = vmatpush1.msra.mxu0 0.0
  %78 = vmatprep.subr.mxu0 0.0
  %79 = vmatpush1.msra.mxu0 0.0
  %80 = vmatprep.subr.mxu0 0.0
  %81 = vmatpush1.msra.mxu0 0.0
  %82 = vmatprep.subr.mxu0 0.0
  %83 = vmatpush1.msra.mxu0 0.0
  %84 = vmatprep.subr.mxu0 0.0
  %85 = vmatpush1.msra.mxu0 0.0
  %86 = vmatprep.subr.mxu0 0.0
  %87 = vmatpush1.msra.mxu0 0.0
  %88 = vmatprep.subr.mxu0 0.0
  %89 = vmatpush1.msra.mxu0 0.0
  %90 = vmatprep.subr.mxu0 0.0
  %91 = vmatpush1.msra.mxu0 0.0
  %92 = vmatprep.subr.mxu0 0.0
  %93 = vmatpush1.msra.mxu0 0.0
  %94 = vmatprep.subr.mxu0 0.0
  %95 = vmatpush1.msra.mxu0 0.0
  %96 = vmatprep.subr.mxu0 0.0
  %97 = vmatpush1.msra.mxu0 0.0
  %98 = vmatprep.subr.mxu0 0.0
  %99 = vmatpush1.msra.mxu0 0.0
  %100 = vmatprep.subr.mxu0 0.0
  %101 = vmatpush1.msra.mxu0 0.0
  %102 = vmatprep.subr.mxu0 0.0
  %103 = vmatpush1.msra.mxu0 0.0
  %104 = vmatprep.mubr.f32.mxu0 0.0
  %105 = vmatmul.mubr.f32.gmra.mrb[0].mxu0 %v38
  %v106 = vpop.f32.mrb[0].mxu0
  %v107 = vadd.f32 %v34, %v106
  %v108 = vpop.f32.mrb[0].mxu0
  %v109 = vadd.f32 %v34, %v108
  %110 = vdwg.mxu0
  %v111 = vmax.f32 %v107, 0.0
  %v112 = vmax.f32 %v109, 0.0
  %113 = vst [vmem:[%s6] sm:$0xff] %v111
  %vm114 = vcmask 130048
  %115 = vst.msk [vmem:[%s6 + $0x8] sm:$0xff] %vm114, %v112
  %v116 = vld [vmem:[%s1] sm:$0xff]
  %118 = vset.pattern.permute.xlu0 0
  %119 = vperm.xlu0 %118, %v28
  %v120 = vpop.permute.xlu0 %119
  %v123 = vsel %vm36, %v27, 0
  %125 = vmatprep.subr.mxu0 0.0
  %126 = vmatpush1.msra.mxu0 %v116
  %127 = vmatprep.subr.mxu0 0.0
  %128 = vmatpush1.msra.mxu0 0.0
  %129 = vmatprep.subr.mxu0 0.0
  %130 = vmatpush1.msra.mxu0 0.0
  %131 = vmatprep.subr.mxu0 0.0
  %132 = vmatpush1.msra.mxu0 0.0
  %133 = vmatprep.subr.mxu0 0.0
  %134 = vmatpush1.msra.mxu0 0.0
  %135 = vmatprep.subr.mxu0 0.0
  %136 = vmatpush1.msra.mxu0 0.0
  %137 = vmatprep.subr.mxu0 0.0
  %138 = vmatpush1.msra.mxu0 0.0
  %139 = vmatprep.subr.mxu0 0.0
  %140 = vmatpush1.msra.mxu0 0.0
  %141 = vmatprep.subr.mxu0 0.0
  %142 = vmatpush1.msra.mxu0 0.0
  %143 = vmatprep.subr.mxu0 0.0
  %144 = vmatpush1.msra.mxu0 0.0
  %145 = vmatprep.subr.mxu0 0.0
  %146 = vmatpush1.msra.mxu0 0.0
  %147 = vmatprep.subr.mxu0 0.0
  %148 = vmatpush1.msra.mxu0 0.0
  %149 = vmatprep.subr.mxu0 0.0
  %150 = vmatpush1.msra.mxu0 0.0
  %151 = vmatprep.subr.mxu0 0.0
  %152 = vmatpush1.msra.mxu0 0.0
  %153 = vmatprep.subr.mxu0 0.0
  %154 = vmatpush1.msra.mxu0 0.0
  %155 = vmatprep.subr.mxu0 0.0
  %156 = vmatpush1.msra.mxu0 0.0
  %157 = vmatprep.subr.mxu0 0.0
  %158 = vmatpush1.msra.mxu0 0.0
  %159 = vmatprep.subr.mxu0 0.0
  %160 = vmatpush1.msra.mxu0 0.0
  %161 = vmatprep.subr.mxu0 0.0
  %162 = vmatpush1.msra.mxu0 0.0
  %163 = vmatprep.subr.mxu0 0.0
  %164 = vmatpush1.msra.mxu0 0.0
  %165 = vmatprep.subr.mxu0 0.0
  %166 = vmatpush1.msra.mxu0 0.0
  %167 = vmatprep.subr.mxu0 0.0
  %168 = vmatpush1.msra.mxu0 0.0
  %169 = vmatprep.subr.mxu0 0.0
  %170 = vmatpush1.msra.mxu0 0.0
  %171 = vmatprep.subr.mxu0 0.0
  %172 = vmatpush1.msra.mxu0 0.0
  %173 = vmatprep.subr.mxu0 0.0
  %174 = vmatpush1.msra.mxu0 0.0
  %175 = vmatprep.subr.mxu0 0.0
  %176 = vmatpush1.msra.mxu0 0.0
  %177 = vmatprep.subr.mxu0 0.0
  %178 = vmatpush1.msra.mxu0 0.0
  %179 = vmatprep.subr.mxu0 0.0
  %180 = vmatpush1.msra.mxu0 0.0
  %181 = vmatprep.subr.mxu0 0.0
  %182 = vmatpush1.msra.mxu0 0.0
  %183 = vmatprep.subr.mxu0 0.0
  %184 = vmatpush1.msra.mxu0 0.0
  %185 = vmatprep.subr.mxu0 0.0
  %186 = vmatpush1.msra.mxu0 0.0
  %187 = vmatprep.subr.mxu0 0.0
  %188 = vmatpush1.msra.mxu0 0.0
  %189 = vmatprep.mubr.f32.mxu0 0.0
  %190 = vmatmul.mubr.f32.gmra.mrb[0].mxu0 %v123
  %v191 = vpop.f32.mrb[0].mxu0
  %v192 = vadd.f32 %v120, %v191
  %v193 = vpop.f32.mrb[0].mxu0
  %194 = vdwg.mxu0
  %v195 = vmax.f32 %v192, 0.0
  %vm196 = vcmask 326656
  %197 = vst.msk [vmem:[%s7] sm:$0xff] %vm196, %v195
  %s198 = scalar_lea.vmem %s0, 16
  %v199 = vld [vmem:[%s198] sm:$0xff]
  %v200 = vld [vmem:[%s198 + $0x8] sm:$0xff]
  %201 = vmatprep.subr.mxu0 %v200
  %202 = vmatpush1.msra.mxu0 %v199
  %203 = vmatprep.subr.mxu0 0.0
  %204 = vmatpush1.msra.mxu0 0.0
  %205 = vmatprep.subr.mxu0 0.0
  %206 = vmatpush1.msra.mxu0 0.0
  %207 = vmatprep.subr.mxu0 0.0
  %208 = vmatpush1.msra.mxu0 0.0
  %209 = vmatprep.subr.mxu0 0.0
  %210 = vmatpush1.msra.mxu0 0.0
  %211 = vmatprep.subr.mxu0 0.0
  %212 = vmatpush1.msra.mxu0 0.0
  %213 = vmatprep.subr.mxu0 0.0
  %214 = vmatpush1.msra.mxu0 0.0
  %215 = vmatprep.subr.mxu0 0.0
  %216 = vmatpush1.msra.mxu0 0.0
  %217 = vmatprep.subr.mxu0 0.0
  %218 = vmatpush1.msra.mxu0 0.0
  %219 = vmatprep.subr.mxu0 0.0
  %220 = vmatpush1.msra.mxu0 0.0
  %221 = vmatprep.subr.mxu0 0.0
  %222 = vmatpush1.msra.mxu0 0.0
  %223 = vmatprep.subr.mxu0 0.0
  %224 = vmatpush1.msra.mxu0 0.0
  %225 = vmatprep.subr.mxu0 0.0
  %226 = vmatpush1.msra.mxu0 0.0
  %227 = vmatprep.subr.mxu0 0.0
  %228 = vmatpush1.msra.mxu0 0.0
  %229 = vmatprep.subr.mxu0 0.0
  %230 = vmatpush1.msra.mxu0 0.0
  %231 = vmatprep.subr.mxu0 0.0
  %232 = vmatpush1.msra.mxu0 0.0
  %233 = vmatprep.subr.mxu0 0.0
  %234 = vmatpush1.msra.mxu0 0.0
  %235 = vmatprep.subr.mxu0 0.0
  %236 = vmatpush1.msra.mxu0 0.0
  %237 = vmatprep.subr.mxu0 0.0
  %238 = vmatpush1.msra.mxu0 0.0
  %239 = vmatprep.subr.mxu0 0.0
  %240 = vmatpush1.msra.mxu0 0.0
  %241 = vmatprep.subr.mxu0 0.0
  %242 = vmatpush1.msra.mxu0 0.0
  %243 = vmatprep.subr.mxu0 0.0
  %244 = vmatpush1.msra.mxu0 0.0
  %245 = vmatprep.subr.mxu0 0.0
  %246 = vmatpush1.msra.mxu0 0.0
  %247 = vmatprep.subr.mxu0 0.0
  %248 = vmatpush1.msra.mxu0 0.0
  %249 = vmatprep.subr.mxu0 0.0
  %250 = vmatpush1.msra.mxu0 0.0
  %251 = vmatprep.subr.mxu0 0.0
  %252 = vmatpush1.msra.mxu0 0.0
  %253 = vmatprep.subr.mxu0 0.0
  %254 = vmatpush1.msra.mxu0 0.0
  %255 = vmatprep.subr.mxu0 0.0
  %256 = vmatpush1.msra.mxu0 0.0
  %257 = vmatprep.subr.mxu0 0.0
  %258 = vmatpush1.msra.mxu0 0.0
  %259 = vmatprep.subr.mxu0 0.0
  %260 = vmatpush1.msra.mxu0 0.0
  %261 = vmatprep.subr.mxu0 0.0
  %262 = vmatpush1.msra.mxu0 0.0
  %263 = vmatprep.subr.mxu0 0.0
  %264 = vmatpush1.msra.mxu0 0.0
  %265 = vmatprep.mubr.f32.mxu0 0.0
  %266 = vmatmul.mubr.f32.gmra.mrb[0].mxu0 %v38
  %v267 = vpop.f32.mrb[0].mxu0
  %v268 = vadd.f32 %v34, %v267
  %v269 = vpop.f32.mrb[0].mxu0
  %v270 = vadd.f32 %v34, %v269
  %271 = vdwg.mxu0
  %v272 = vmax.f32 %v268, 0.0
  %v273 = vmax.f32 %v270, 0.0
  %s274 = scalar_lea.vmem %s6, 16
  %275 = vst [vmem:[%s274] sm:$0xff] %v272
  %276 = vst.msk [vmem:[%s274 + $0x8] sm:$0xff] %vm114, %v273
  %s277 = scalar_lea.vmem %s1, 8
  %v278 = vld [vmem:[%s277] sm:$0xff]
  %279 = vmatprep.subr.mxu0 0.0
  %280 = vmatpush1.msra.mxu0 %v278
  %281 = vmatprep.subr.mxu0 0.0
  %282 = vmatpush1.msra.mxu0 0.0
  %283 = vmatprep.subr.mxu0 0.0
  %284 = vmatpush1.msra.mxu0 0.0
  %285 = vmatprep.subr.mxu0 0.0
  %286 = vmatpush1.msra.mxu0 0.0
  %287 = vmatprep.subr.mxu0 0.0
  %288 = vmatpush1.msra.mxu0 0.0
  %289 = vmatprep.subr.mxu0 0.0
  %290 = vmatpush1.msra.mxu0 0.0
  %291 = vmatprep.subr.mxu0 0.0
  %292 = vmatpush1.msra.mxu0 0.0
  %293 = vmatprep.subr.mxu0 0.0
  %294 = vmatpush1.msra.mxu0 0.0
  %295 = vmatprep.subr.mxu0 0.0
  %296 = vmatpush1.msra.mxu0 0.0
  %297 = vmatprep.subr.mxu0 0.0
  %298 = vmatpush1.msra.mxu0 0.0
  %299 = vmatprep.subr.mxu0 0.0
  %300 = vmatpush1.msra.mxu0 0.0
  %301 = vmatprep.subr.mxu0 0.0
  %302 = vmatpush1.msra.mxu0 0.0
  %303 = vmatprep.subr.mxu0 0.0
  %304 = vmatpush1.msra.mxu0 0.0
  %305 = vmatprep.subr.mxu0 0.0
  %306 = vmatpush1.msra.mxu0 0.0
  %307 = vmatprep.subr.mxu0 0.0
  %308 = vmatpush1.msra.mxu0 0.0
  %309 = vmatprep.subr.mxu0 0.0
  %310 = vmatpush1.msra.mxu0 0.0
  %311 = vmatprep.subr.mxu0 0.0
  %312 = vmatpush1.msra.mxu0 0.0
  %313 = vmatprep.subr.mxu0 0.0
  %314 = vmatpush1.msra.mxu0 0.0
  %315 = vmatprep.subr.mxu0 0.0
  %316 = vmatpush1.msra.mxu0 0.0
  %317 = vmatprep.subr.mxu0 0.0
  %318 = vmatpush1.msra.mxu0 0.0
  %319 = vmatprep.subr.mxu0 0.0
  %320 = vmatpush1.msra.mxu0 0.0
  %321 = vmatprep.subr.mxu0 0.0
  %322 = vmatpush1.msra.mxu0 0.0
  %323 = vmatprep.subr.mxu0 0.0
  %324 = vmatpush1.msra.mxu0 0.0
  %325 = vmatprep.subr.mxu0 0.0
  %326 = vmatpush1.msra.mxu0 0.0
  %327 = vmatprep.subr.mxu0 0.0
  %328 = vmatpush1.msra.mxu0 0.0
  %329 = vmatprep.subr.mxu0 0.0
  %330 = vmatpush1.msra.mxu0 0.0
  %331 = vmatprep.subr.mxu0 0.0
  %332 = vmatpush1.msra.mxu0 0.0
  %333 = vmatprep.subr.mxu0 0.0
  %334 = vmatpush1.msra.mxu0 0.0
  %335 = vmatprep.subr.mxu0 0.0
  %336 = vmatpush1.msra.mxu0 0.0
  %337 = vmatprep.subr.mxu0 0.0
  %338 = vmatpush1.msra.mxu0 0.0
  %339 = vmatprep.subr.mxu0 0.0
  %340 = vmatpush1.msra.mxu0 0.0
  %341 = vmatprep.subr.mxu0 0.0
  %342 = vmatpush1.msra.mxu0 0.0
  %343 = vmatprep.mubr.f32.mxu0 0.0
  %344 = vmatmul.mubr.f32.gmra.mrb[0].mxu0 %v123
  %v345 = vpop.f32.mrb[0].mxu0
  %v346 = vadd.f32 %v120, %v345
  %v347 = vpop.f32.mrb[0].mxu0
  %348 = vdwg.mxu0
  %v349 = vmax.f32 %v346, 0.0
  %s350 = scalar_lea.vmem %s7, 8
  %351 = vst.msk [vmem:[%s350] sm:$0xff] %vm196, %v349
  // Predicated region
  $region26: #{ffc_forward.4} parent=0 // pred_check
    _
  $region27: #{ffc_forward.4} parent=0 // pred_check_branch
    %353 = sbr.rel (0) target = $region29
  $region28: #{ffc_forward.4} parent=0 // pred_region
    _
  $region29: #{ffc_forward.4} parent=0 // pred_fallthru
    _
  // Predicated region
  $region30: #{ffc_forward.4} parent=0 // pred_check
    _
  $region31: #{ffc_forward.4} parent=0 // pred_check_branch
    %355 = sbr.rel (0) target = $region33
  $region32: #{ffc_forward.4} parent=0 // pred_region
    _
  $region33: #{ffc_forward.4} parent=0 // pred_fallthru
    _
  // Predicated region
  $region34: #{ffc_forward.4} parent=0 // pred_check
    _
  $region35: #{ffc_forward.4} parent=0 // pred_check_branch
    %357 = sbr.rel (0) target = $region37
  $region36: #{ffc_forward.4} parent=0 // pred_region
    _
  $region37: #{ffc_forward.4} parent=0 // pred_fallthru
    _
  // Predicated region
  $region38: #{ffc_forward.4} parent=0 // pred_check
    _
  $region39: #{ffc_forward.4} parent=0 // pred_check_branch
    %359 = sbr.rel (0) target = $region41
  $region40: #{ffc_forward.4} parent=0 // pred_region
    _
  $region41: #{ffc_forward.4} parent=0 // pred_fallthru
    _

// kernel: reverse.0
$region0: #{reverse.0}
  %s0 = inlined_call_operand.vmem [shape: f32[2,4,16,7], index: 0, kind: input, shape index: {}]
  %s1 = inlined_call_operand.vmem [shape: f32[2,4,16,7], index: 1, kind: output, shape index: {}]
  $region1: #{reverse.0} parent=0
    #allocation0 [shape = 'u8[65536]{0}', space=vmem, size = 0x10000, scoped, tag = 'operand span for operand 0']
    #allocation1 [shape = 'u8[32768]{0}', space=vmem, size = 0x8000, scoped, tag = 'operand span for operand 1']
    %s2 = scalar_lea.vmem [#allocation0], 8
    // Predicated region
    $region2: #{reverse.0} parent=1 // pred_check
      _
    $region3: #{reverse.0} parent=1 // pred_check_branch
      %4 = sbr.rel (0) target = $region5
    $region4: #{reverse.0} parent=1 // pred_region
      // Predicated region
      $region6: #{reverse.0} parent=4 // pred_check
        _
      $region7: #{reverse.0} parent=4 // pred_check_branch
        %6 = sbr.rel (0) target = $region9
      $region8: #{reverse.0} parent=4 // pred_region
        // Predicated region
        $region21: #{reverse.0} parent=8 // pred_check
          _
        $region22: #{reverse.0} parent=8 // pred_check_branch
          %35 = sbr.rel (0) target = $region24
        $region23: #{reverse.0} parent=8 // pred_region
          loop: start=0, step=1, limit=1
          $region25: #{reverse.0} parent=23 // loop_pre_header
            _
          $region26: #{reverse.0} parent=23 // loop_header
            %s37 = sphi 0, %s41
            %p38 = scmp.ge.s32.totalorder %s37, 1
            %s42 = sphi %s0, %s0
            %s43 = sphi %s2, %s2
          $region27: #{reverse.0} parent=23 // loop_header_branch
            %40 = sbr.rel (%p38) target = $region31
          $region28: #{reverse.0} parent=23 // loop_body
            %v44 = vld [vmem:[%s42] sm:$0xff]
            %45 = vst [vmem:[%s43] sm:$0xff] %v44
            %v46 = vld [vmem:[%s42 + $0x8] sm:$0xff]
            %47 = vst [vmem:[%s43 + $0x10] sm:$0xff] %v46
            %v48 = vld [vmem:[%s42 + $0x10] sm:$0xff]
            %49 = vst [vmem:[%s43 + $0x20] sm:$0xff] %v48
            %v50 = vld [vmem:[%s42 + $0x18] sm:$0xff]
            %51 = vst [vmem:[%s43 + $0x30] sm:$0xff] %v50
            %v52 = vld [vmem:[%s42 + $0x20] sm:$0xff]
            %53 = vst [vmem:[%s43 + $0x40] sm:$0xff] %v52
            %v54 = vld [vmem:[%s42 + $0x28] sm:$0xff]
            %55 = vst [vmem:[%s43 + $0x50] sm:$0xff] %v54
            %v56 = vld [vmem:[%s42 + $0x30] sm:$0xff]
            %57 = vst [vmem:[%s43 + $0x60] sm:$0xff] %v56
            %v58 = vld [vmem:[%s42 + $0x38] sm:$0xff]
            %59 = vst [vmem:[%s43 + $0x70] sm:$0xff] %v58
          $region29: #{reverse.0} parent=23 // loop_footer
            %s41 = sadd.s32 1, %s37
          $region30: #{reverse.0} parent=23 // loop_footer_branch
            %36 = sbr.rel target = $region26
          $region31: #{reverse.0} parent=23 // loop_exit
            _
        $region24: #{reverse.0} parent=8 // pred_fallthru
          _
        // Predicated region
        $region32: #{reverse.0} parent=8 // pred_check
          _
        $region33: #{reverse.0} parent=8 // pred_check_branch
          %61 = sbr.rel target = $region35
        $region34: #{reverse.0} parent=8 // pred_region
          _
        $region35: #{reverse.0} parent=8 // pred_fallthru
          _
      $region9: #{reverse.0} parent=4 // pred_fallthru
        _
      // Predicated region
      $region10: #{reverse.0} parent=4 // pred_check
        _
      $region11: #{reverse.0} parent=4 // pred_check_branch
        %8 = sbr.rel target = $region13
      $region12: #{reverse.0} parent=4 // pred_region
        loop: start=0, step=1, limit=1
        $region14: #{reverse.0} parent=12 // loop_pre_header
          _
        $region15: #{reverse.0} parent=12 // loop_header
          %s11 = sphi 0, %s15
          %p12 = scmp.ge.s32.totalorder %s11, 1
          %s16 = sphi %s0, %s0
          %s17 = sphi %s2, %s2
        $region16: #{reverse.0} parent=12 // loop_header_branch
          %14 = sbr.rel (%p12) target = $region20
        $region17: #{reverse.0} parent=12 // loop_body
          %v18 = vld [vmem:[%s16] sm:$0xff]
          %19 = vst [vmem:[%s17] sm:$0xff] %v18
          %v20 = vld [vmem:[%s16 + $0x8] sm:$0xff]
          %21 = vst [vmem:[%s17 + $0x10] sm:$0xff] %v20
          %v22 = vld [vmem:[%s16 + $0x10] sm:$0xff]
          %23 = vst [vmem:[%s17 + $0x20] sm:$0xff] %v22
          %v24 = vld [vmem:[%s16 + $0x18] sm:$0xff]
          %25 = vst [vmem:[%s17 + $0x30] sm:$0xff] %v24
          %v26 = vld [vmem:[%s16 + $0x20] sm:$0xff]
          %27 = vst [vmem:[%s17 + $0x40] sm:$0xff] %v26
          %v28 = vld [vmem:[%s16 + $0x28] sm:$0xff]
          %29 = vst [vmem:[%s17 + $0x50] sm:$0xff] %v28
          %v30 = vld [vmem:[%s16 + $0x30] sm:$0xff]
          %31 = vst [vmem:[%s17 + $0x60] sm:$0xff] %v30
          %v32 = vld [vmem:[%s16 + $0x38] sm:$0xff]
          %33 = vst [vmem:[%s17 + $0x70] sm:$0xff] %v32
        $region18: #{reverse.0} parent=12 // loop_footer
          %s15 = sadd.s32 1, %s11
        $region19: #{reverse.0} parent=12 // loop_footer_branch
          %10 = sbr.rel target = $region15
        $region20: #{reverse.0} parent=12 // loop_exit
          _
      $region13: #{reverse.0} parent=4 // pred_fallthru
        _
    $region5: #{reverse.0} parent=1 // pred_fallthru
      _
    %62 = vnop
    %s63 = scalar_lea.vmem [#allocation0], 7
    %v64 = vld [vmem:[%s63] ss:$-1 sm:$0xff]
    %v65 = vrot.slane %v64, 1
    %66 = vst [vmem:[#allocation1] sm:$0xff] %v65
    %s67 = scalar_lea.vmem [#allocation0], 8
    %s68 = scalar_lea.vmem %s67, 7 [#allocation0]
    %v69 = vld [vmem:[%s68] ss:$-1 sm:$0xff]
    %v70 = vrot.slane %v69, 1
    %v71 = vlaneseq
    %v72 = vshrl.u32 %v71, 7
    %vm73 = vcmp.lt.s32.totalorder %v72, 7
    %74 = vst.msk [vmem:[#allocation1] sm:$0xff] %vm73, %v70
    %s75 = scalar_lea.vmem [#allocation1], 8
    %s76 = scalar_lea.vmem [#allocation0], 16
    %s77 = scalar_lea.vmem %s76, 7 [#allocation0]
    %v78 = vld [vmem:[%s77] ss:$-1 sm:$0xff]
    %v79 = vrot.slane %v78, 1
    %80 = vst [vmem:[%s75] sm:$0xff] %v79
    %s81 = scalar_lea.vmem %s76, 8 [#allocation0]
    %s82 = scalar_lea.vmem %s81, 7 [#allocation0]
    %v83 = vld [vmem:[%s82] ss:$-1 sm:$0xff]
    %v84 = vrot.slane %v83, 1
    %v85 = vlaneseq
    %v86 = vshrl.u32 %v85, 7
    %vm87 = vcmp.lt.s32.totalorder %v86, 7
    %88 = vst.msk [vmem:[%s75] sm:$0xff] %vm87, %v84
    %s89 = scalar_lea.vmem [#allocation1], 16
    %s90 = scalar_lea.vmem [#allocation0], 32
    %s91 = scalar_lea.vmem %s90, 7 [#allocation0]
    %v92 = vld [vmem:[%s91] ss:$-1 sm:$0xff]
    %v93 = vrot.slane %v92, 1
    %94 = vst [vmem:[%s89] sm:$0xff] %v93
    %s95 = scalar_lea.vmem %s90, 8 [#allocation0]
    %s96 = scalar_lea.vmem %s95, 7 [#allocation0]
    %v97 = vld [vmem:[%s96] ss:$-1 sm:$0xff]
    %v98 = vrot.slane %v97, 1
    %v99 = vlaneseq
    %v100 = vshrl.u32 %v99, 7
    %vm101 = vcmp.lt.s32.totalorder %v100, 7
    %102 = vst.msk [vmem:[%s89] sm:$0xff] %vm101, %v98
    %s103 = scalar_lea.vmem [#allocation1], 24
    %s104 = scalar_lea.vmem [#allocation0], 48
    %s105 = scalar_lea.vmem %s104, 7 [#allocation0]
    %v106 = vld [vmem:[%s105] ss:$-1 sm:$0xff]
    %v107 = vrot.slane %v106, 1
    %108 = vst [vmem:[%s103] sm:$0xff] %v107
    %s109 = scalar_lea.vmem %s104, 8 [#allocation0]
    %s110 = scalar_lea.vmem %s109, 7 [#allocation0]
    %v111 = vld [vmem:[%s110] ss:$-1 sm:$0xff]
    %v112 = vrot.slane %v111, 1
    %v113 = vlaneseq
    %v114 = vshrl.u32 %v113, 7
    %vm115 = vcmp.lt.s32.totalorder %v114, 7
    %116 = vst.msk [vmem:[%s103] sm:$0xff] %vm115, %v112
    %s117 = scalar_lea.vmem [#allocation1], 32
    %s118 = scalar_lea.vmem [#allocation0], 64
    %s119 = scalar_lea.vmem %s118, 7 [#allocation0]
    %v120 = vld [vmem:[%s119] ss:$-1 sm:$0xff]
    %v121 = vrot.slane %v120, 1
    %122 = vst [vmem:[%s117] sm:$0xff] %v121
    %s123 = scalar_lea.vmem %s118, 8 [#allocation0]
    %s124 = scalar_lea.vmem %s123, 7 [#allocation0]
    %v125 = vld [vmem:[%s124] ss:$-1 sm:$0xff]
    %v126 = vrot.slane %v125, 1
    %v127 = vlaneseq
    %v128 = vshrl.u32 %v127, 7
    %vm129 = vcmp.lt.s32.totalorder %v128, 7
    %130 = vst.msk [vmem:[%s117] sm:$0xff] %vm129, %v126
    %s131 = scalar_lea.vmem [#allocation1], 40
    %s132 = scalar_lea.vmem [#allocation0], 80
    %s133 = scalar_lea.vmem %s132, 7 [#allocation0]
    %v134 = vld [vmem:[%s133] ss:$-1 sm:$0xff]
    %v135 = vrot.slane %v134, 1
    %136 = vst [vmem:[%s131] sm:$0xff] %v135
    %s137 = scalar_lea.vmem %s132, 8 [#allocation0]
    %s138 = scalar_lea.vmem %s137, 7 [#allocation0]
    %v139 = vld [vmem:[%s138] ss:$-1 sm:$0xff]
    %v140 = vrot.slane %v139, 1
    %v141 = vlaneseq
    %v142 = vshrl.u32 %v141, 7
    %vm143 = vcmp.lt.s32.totalorder %v142, 7
    %144 = vst.msk [vmem:[%s131] sm:$0xff] %vm143, %v140
    %s145 = scalar_lea.vmem [#allocation1], 48
    %s146 = scalar_lea.vmem [#allocation0], 96
    %s147 = scalar_lea.vmem %s146, 7 [#allocation0]
    %v148 = vld [vmem:[%s147] ss:$-1 sm:$0xff]
    %v149 = vrot.slane %v148, 1
    %150 = vst [vmem:[%s145] sm:$0xff] %v149
    %s151 = scalar_lea.vmem %s146, 8 [#allocation0]
    %s152 = scalar_lea.vmem %s151, 7 [#allocation0]
    %v153 = vld [vmem:[%s152] ss:$-1 sm:$0xff]
    %v154 = vrot.slane %v153, 1
    %v155 = vlaneseq
    %v156 = vshrl.u32 %v155, 7
    %vm157 = vcmp.lt.s32.totalorder %v156, 7
    %158 = vst.msk [vmem:[%s145] sm:$0xff] %vm157, %v154
    %s159 = scalar_lea.vmem [#allocation1], 56
    %s160 = scalar_lea.vmem [#allocation0], 112
    %s161 = scalar_lea.vmem %s160, 7 [#allocation0]
    %v162 = vld [vmem:[%s161] ss:$-1 sm:$0xff]
    %v163 = vrot.slane %v162, 1
    %164 = vst [vmem:[%s159] sm:$0xff] %v163
    %s165 = scalar_lea.vmem %s160, 8 [#allocation0]
    %s166 = scalar_lea.vmem %s165, 7 [#allocation0]
    %v167 = vld [vmem:[%s166] ss:$-1 sm:$0xff]
    %v168 = vrot.slane %v167, 1
    %v169 = vlaneseq
    %v170 = vshrl.u32 %v169, 7
    %vm171 = vcmp.lt.s32.totalorder %v170, 7
    %172 = vst.msk [vmem:[%s159] sm:$0xff] %vm171, %v168
    // Predicated region
    $region36: #{reverse.0} parent=1 // pred_check
      _
    $region37: #{reverse.0} parent=1 // pred_check_branch
      %174 = sbr.rel (0) target = $region39
    $region38: #{reverse.0} parent=1 // pred_region
      // Predicated region
      $region40: #{reverse.0} parent=38 // pred_check
        _
      $region41: #{reverse.0} parent=38 // pred_check_branch
        %176 = sbr.rel (0) target = $region43
      $region42: #{reverse.0} parent=38 // pred_region
        // Predicated region
        $region55: #{reverse.0} parent=42 // pred_check
          _
        $region56: #{reverse.0} parent=42 // pred_check_branch
          %205 = sbr.rel (0) target = $region58
        $region57: #{reverse.0} parent=42 // pred_region
          loop: start=0, step=1, limit=1
          $region59: #{reverse.0} parent=57 // loop_pre_header
            _
          $region60: #{reverse.0} parent=57 // loop_header
            %s207 = sphi 0, %s211
            %p208 = scmp.ge.s32.totalorder %s207, 1
            %s212 = sphi [#allocation1], [#allocation1]
            %s213 = sphi %s1, %s1
          $region61: #{reverse.0} parent=57 // loop_header_branch
            %210 = sbr.rel (%p208) target = $region65
          $region62: #{reverse.0} parent=57 // loop_body
            %v214 = vld [vmem:[%s212] sm:$0xff]
            %215 = vst [vmem:[%s213] sm:$0xff] %v214
            %v216 = vld [vmem:[%s212 + $0x8] sm:$0xff]
            %217 = vst [vmem:[%s213 + $0x8] sm:$0xff] %v216
            %v218 = vld [vmem:[%s212 + $0x10] sm:$0xff]
            %219 = vst [vmem:[%s213 + $0x10] sm:$0xff] %v218
            %v220 = vld [vmem:[%s212 + $0x18] sm:$0xff]
            %221 = vst [vmem:[%s213 + $0x18] sm:$0xff] %v220
            %v222 = vld [vmem:[%s212 + $0x20] sm:$0xff]
            %223 = vst [vmem:[%s213 + $0x20] sm:$0xff] %v222
            %v224 = vld [vmem:[%s212 + $0x28] sm:$0xff]
            %225 = vst [vmem:[%s213 + $0x28] sm:$0xff] %v224
            %v226 = vld [vmem:[%s212 + $0x30] sm:$0xff]
            %227 = vst [vmem:[%s213 + $0x30] sm:$0xff] %v226
            %v228 = vld [vmem:[%s212 + $0x38] sm:$0xff]
            %229 = vst [vmem:[%s213 + $0x38] sm:$0xff] %v228
          $region63: #{reverse.0} parent=57 // loop_footer
            %s211 = sadd.s32 1, %s207
          $region64: #{reverse.0} parent=57 // loop_footer_branch
            %206 = sbr.rel target = $region60
          $region65: #{reverse.0} parent=57 // loop_exit
            _
        $region58: #{reverse.0} parent=42 // pred_fallthru
          _
        // Predicated region
        $region66: #{reverse.0} parent=42 // pred_check
          _
        $region67: #{reverse.0} parent=42 // pred_check_branch
          %231 = sbr.rel target = $region69
        $region68: #{reverse.0} parent=42 // pred_region
          _
        $region69: #{reverse.0} parent=42 // pred_fallthru
          _
      $region43: #{reverse.0} parent=38 // pred_fallthru
        _
      // Predicated region
      $region44: #{reverse.0} parent=38 // pred_check
        _
      $region45: #{reverse.0} parent=38 // pred_check_branch
        %178 = sbr.rel target = $region47
      $region46: #{reverse.0} parent=38 // pred_region
        loop: start=0, step=1, limit=1
        $region48: #{reverse.0} parent=46 // loop_pre_header
          _
        $region49: #{reverse.0} parent=46 // loop_header
          %s181 = sphi 0, %s185
          %p182 = scmp.ge.s32.totalorder %s181, 1
          %s186 = sphi [#allocation1], [#allocation1]
          %s187 = sphi %s1, %s1
        $region50: #{reverse.0} parent=46 // loop_header_branch
          %184 = sbr.rel (%p182) target = $region54
        $region51: #{reverse.0} parent=46 // loop_body
          %v188 = vld [vmem:[%s186] sm:$0xff]
          %189 = vst [vmem:[%s187] sm:$0xff] %v188
          %v190 = vld [vmem:[%s186 + $0x8] sm:$0xff]
          %191 = vst [vmem:[%s187 + $0x8] sm:$0xff] %v190
          %v192 = vld [vmem:[%s186 + $0x10] sm:$0xff]
          %193 = vst [vmem:[%s187 + $0x10] sm:$0xff] %v192
          %v194 = vld [vmem:[%s186 + $0x18] sm:$0xff]
          %195 = vst [vmem:[%s187 + $0x18] sm:$0xff] %v194
          %v196 = vld [vmem:[%s186 + $0x20] sm:$0xff]
          %197 = vst [vmem:[%s187 + $0x20] sm:$0xff] %v196
          %v198 = vld [vmem:[%s186 + $0x28] sm:$0xff]
          %199 = vst [vmem:[%s187 + $0x28] sm:$0xff] %v198
          %v200 = vld [vmem:[%s186 + $0x30] sm:$0xff]
          %201 = vst [vmem:[%s187 + $0x30] sm:$0xff] %v200
          %v202 = vld [vmem:[%s186 + $0x38] sm:$0xff]
          %203 = vst [vmem:[%s187 + $0x38] sm:$0xff] %v202
        $region52: #{reverse.0} parent=46 // loop_footer
          %s185 = sadd.s32 1, %s181
        $region53: #{reverse.0} parent=46 // loop_footer_branch
          %180 = sbr.rel target = $region49
        $region54: #{reverse.0} parent=46 // loop_exit
          _
      $region47: #{reverse.0} parent=38 // pred_fallthru
        _
    $region39: #{reverse.0} parent=1 // pred_fallthru
      _
    %232 = vnop

// kernel: ffc_forward.5
$region0: #{ffc_forward.5}
  #allocation0 [shape = 'u32[]', space=smem, size = 0x4, offset = 0x4, fixed_abs, tag = 'smem constant byte address 0x4 - core index']
  #allocation1 [shape = 'u32[144,128]{1,0:T(1,128)}', space=vmem, size = 0x12000, scoped, tag = 'internal scratch']
  %s0 = inlined_call_operand.vmem [shape: f32[2,4,256], index: 0, kind: input, shape index: {}]
  %s1 = inlined_call_operand.vmem [shape: f32[2,4,256], index: 1, kind: input, shape index: {}]
  %s2 = inlined_call_operand.vmem [shape: f32[2,4,256], index: 2, kind: input, shape index: {}]
  %s3 = inlined_call_operand.vmem [shape: f32[8,4], index: 3, kind: input, shape index: {}]
  %s4 = inlined_call_operand.vmem [shape: f32[2,8,256], index: 4, kind: input, shape index: {}, may-alias: {4,5}]
  %s5 = inlined_call_operand.vmem [shape: f32[2,8,256], index: 5, kind: output, shape index: {}, may-alias: {4,5}]
  %s6 = sld [smem:[#allocation0]]
  $region30: #{ffc_forward.5} parent=0
    _
  %s8 = ssub.s32 1, %s6
  %s9 = scalar_select 0, %s8, %s6
  // Predicated region
  $region2: #{ffc_forward.5} parent=0 // pred_check
    _
  $region3: #{ffc_forward.5} parent=0 // pred_check_branch
    %11 = sbr.rel (0) target = $region5
  $region4: #{ffc_forward.5} parent=0 // pred_region
    _
  $region5: #{ffc_forward.5} parent=0 // pred_fallthru
    _
  // Predicated region
  $region6: #{ffc_forward.5} parent=0 // pred_check
    _
  $region7: #{ffc_forward.5} parent=0 // pred_check_branch
    %13 = sbr.rel (0) target = $region9
  $region8: #{ffc_forward.5} parent=0 // pred_region
    _
  $region9: #{ffc_forward.5} parent=0 // pred_fallthru
    _
  // Predicated region
  $region10: #{ffc_forward.5} parent=0 // pred_check
    _
  $region11: #{ffc_forward.5} parent=0 // pred_check_branch
    %15 = sbr.rel (0) target = $region13
  $region12: #{ffc_forward.5} parent=0 // pred_region
    _
  $region13: #{ffc_forward.5} parent=0 // pred_fallthru
    _
  // Predicated region
  $region14: #{ffc_forward.5} parent=0 // pred_check
    _
  $region15: #{ffc_forward.5} parent=0 // pred_check_branch
    %17 = sbr.rel (0) target = $region17
  $region16: #{ffc_forward.5} parent=0 // pred_region
    _
  $region17: #{ffc_forward.5} parent=0 // pred_fallthru
    _
  // Predicated region
  $region18: #{ffc_forward.5} parent=0 // pred_check
    _
  $region19: #{ffc_forward.5} parent=0 // pred_check_branch
    %19 = sbr.rel (0) target = $region21
  $region20: #{ffc_forward.5} parent=0 // pred_region
    _
  $region21: #{ffc_forward.5} parent=0 // pred_fallthru
    _
  %v20 = vld [vmem:[%s3] sm:$0xff]
  %v21 = vld [vmem:[%s0] sm:$0xff]
  %v22 = vld [vmem:[%s1] sm:$0xff]
  %v23 = vadd.f32 %v21, %v22
  %v24 = vld [vmem:[%s2] sm:$0xff]
  %v25 = vadd.f32 %v23, %v24
  %v26 = vld [vmem:[%s4] sm:$0xff]
  %v27 = vld [vmem:[%s4 + $0x8] sm:$0xff]
  %v29 = vcombine.high %v25, %v25
  %vm30 = vcmask 31744
  %v32 = vsel %vm30, %v20, 0
  %vm34 = vcmask 1043456
  %v35 = vsel %vm34, %v25, 0
  %v37 = vsel %vm34, %v29, 0
  %39 = vmatprep.subr.mxu0 %v37
  %40 = vmatpush1.msra.mxu0 %v35
  %41 = vmatprep.subr.mxu0 0.0
  %42 = vmatpush1.msra.mxu0 0.0
  %43 = vmatprep.subr.mxu0 0.0
  %44 = vmatpush1.msra.mxu0 0.0
  %45 = vmatprep.subr.mxu0 0.0
  %46 = vmatpush1.msra.mxu0 0.0
  %47 = vmatprep.subr.mxu0 0.0
  %48 = vmatpush1.msra.mxu0 0.0
  %49 = vmatprep.subr.mxu0 0.0
  %50 = vmatpush1.msra.mxu0 0.0
  %51 = vmatprep.subr.mxu0 0.0
  %52 = vmatpush1.msra.mxu0 0.0
  %53 = vmatprep.subr.mxu0 0.0
  %54 = vmatpush1.msra.mxu0 0.0
  %55 = vmatprep.subr.mxu0 0.0
  %56 = vmatpush1.msra.mxu0 0.0
  %57 = vmatprep.subr.mxu0 0.0
  %58 = vmatpush1.msra.mxu0 0.0
  %59 = vmatprep.subr.mxu0 0.0
  %60 = vmatpush1.msra.mxu0 0.0
  %61 = vmatprep.subr.mxu0 0.0
  %62 = vmatpush1.msra.mxu0 0.0
  %63 = vmatprep.subr.mxu0 0.0
  %64 = vmatpush1.msra.mxu0 0.0
  %65 = vmatprep.subr.mxu0 0.0
  %66 = vmatpush1.msra.mxu0 0.0
  %67 = vmatprep.subr.mxu0 0.0
  %68 = vmatpush1.msra.mxu0 0.0
  %69 = vmatprep.subr.mxu0 0.0
  %70 = vmatpush1.msra.mxu0 0.0
  %71 = vmatprep.subr.mxu0 0.0
  %72 = vmatpush1.msra.mxu0 0.0
  %73 = vmatprep.subr.mxu0 0.0
  %74 = vmatpush1.msra.mxu0 0.0
  %75 = vmatprep.subr.mxu0 0.0
  %76 = vmatpush1.msra.mxu0 0.0
  %77 = vmatprep.subr.mxu0 0.0
  %78 = vmatpush1.msra.mxu0 0.0
  %79 = vmatprep.subr.mxu0 0.0
  %80 = vmatpush1.msra.mxu0 0.0
  %81 = vmatprep.subr.mxu0 0.0
  %82 = vmatpush1.msra.mxu0 0.0
  %83 = vmatprep.subr.mxu0 0.0
  %84 = vmatpush1.msra.mxu0 0.0
  %85 = vmatprep.subr.mxu0 0.0
  %86 = vmatpush1.msra.mxu0 0.0
  %87 = vmatprep.subr.mxu0 0.0
  %88 = vmatpush1.msra.mxu0 0.0
  %89 = vmatprep.subr.mxu0 0.0
  %90 = vmatpush1.msra.mxu0 0.0
  %91 = vmatprep.subr.mxu0 0.0
  %92 = vmatpush1.msra.mxu0 0.0
  %93 = vmatprep.subr.mxu0 0.0
  %94 = vmatpush1.msra.mxu0 0.0
  %95 = vmatprep.subr.mxu0 0.0
  %96 = vmatpush1.msra.mxu0 0.0
  %97 = vmatprep.subr.mxu0 0.0
  %98 = vmatpush1.msra.mxu0 0.0
  %99 = vmatprep.subr.mxu0 0.0
  %100 = vmatpush1.msra.mxu0 0.0
  %101 = vmatprep.subr.mxu0 0.0
  %102 = vmatpush1.msra.mxu0 0.0
  %103 = vmatprep.mubr.f32.mxu0 0.0
  %104 = vmatmul.mubr.f32.gmra.mrb[0].mxu0 %v32
  %v105 = vpop.f32.mrb[0].mxu0
  %v106 = vadd.f32 0.0, %v105
  %v107 = vpop.f32.mrb[0].mxu0
  %v108 = vadd.f32 0.0, %v107
  %109 = vdwg.mxu0
  %v110 = vadd.f32 %v26, %v106
  %v111 = vadd.f32 %v27, %v108
  %112 = vst [vmem:[%s5] sm:$0xff] %v110
  %113 = vst [vmem:[%s5 + $0x8] sm:$0xff] %v111
  %s114 = scalar_lea.vmem %s0, 8
  %v115 = vld [vmem:[%s114] sm:$0xff]
  %s116 = scalar_lea.vmem %s1, 8
  %v117 = vld [vmem:[%s116] sm:$0xff]
  %v118 = vadd.f32 %v115, %v117
  %s119 = scalar_lea.vmem %s2, 8
  %v120 = vld [vmem:[%s119] sm:$0xff]
  %v121 = vadd.f32 %v118, %v120
  %s122 = scalar_lea.vmem %s4, 16
  %v123 = vld [vmem:[%s122] sm:$0xff]
  %v124 = vld [vmem:[%s122 + $0x8] sm:$0xff]
  %v126 = vcombine.high %v121, %v121
  %v127 = vsel %vm34, %v121, 0
  %v129 = vsel %vm34, %v126, 0
  %131 = vmatprep.subr.mxu0 %v129
  %132 = vmatpush1.msra.mxu0 %v127
  %133 = vmatprep.subr.mxu0 0.0
  %134 = vmatpush1.msra.mxu0 0.0
  %135 = vmatprep.subr.mxu0 0.0
  %136 = vmatpush1.msra.mxu0 0.0
  %137 = vmatprep.subr.mxu0 0.0
  %138 = vmatpush1.msra.mxu0 0.0
  %139 = vmatprep.subr.mxu0 0.0
  %140 = vmatpush1.msra.mxu0 0.0
  %141 = vmatprep.subr.mxu0 0.0
  %142 = vmatpush1.msra.mxu0 0.0
  %143 = vmatprep.subr.mxu0 0.0
  %144 = vmatpush1.msra.mxu0 0.0
  %145 = vmatprep.subr.mxu0 0.0
  %146 = vmatpush1.msra.mxu0 0.0
  %147 = vmatprep.subr.mxu0 0.0
  %148 = vmatpush1.msra.mxu0 0.0
  %149 = vmatprep.subr.mxu0 0.0
  %150 = vmatpush1.msra.mxu0 0.0
  %151 = vmatprep.subr.mxu0 0.0
  %152 = vmatpush1.msra.mxu0 0.0
  %153 = vmatprep.subr.mxu0 0.0
  %154 = vmatpush1.msra.mxu0 0.0
  %155 = vmatprep.subr.mxu0 0.0
  %156 = vmatpush1.msra.mxu0 0.0
  %157 = vmatprep.subr.mxu0 0.0
  %158 = vmatpush1.msra.mxu0 0.0
  %159 = vmatprep.subr.mxu0 0.0
  %160 = vmatpush1.msra.mxu0 0.0
  %161 = vmatprep.subr.mxu0 0.0
  %162 = vmatpush1.msra.mxu0 0.0
  %163 = vmatprep.subr.mxu0 0.0
  %164 = vmatpush1.msra.mxu0 0.0
  %165 = vmatprep.subr.mxu0 0.0
  %166 = vmatpush1.msra.mxu0 0.0
  %167 = vmatprep.subr.mxu0 0.0
  %168 = vmatpush1.msra.mxu0 0.0
  %169 = vmatprep.subr.mxu0 0.0
  %170 = vmatpush1.msra.mxu0 0.0
  %171 = vmatprep.subr.mxu0 0.0
  %172 = vmatpush1.msra.mxu0 0.0
  %173 = vmatprep.subr.mxu0 0.0
  %174 = vmatpush1.msra.mxu0 0.0
  %175 = vmatprep.subr.mxu0 0.0
  %176 = vmatpush1.msra.mxu0 0.0
  %177 = vmatprep.subr.mxu0 0.0
  %178 = vmatpush1.msra.mxu0 0.0
  %179 = vmatprep.subr.mxu0 0.0
  %180 = vmatpush1.msra.mxu0 0.0
  %181 = vmatprep.subr.mxu0 0.0
  %182 = vmatpush1.msra.mxu0 0.0
  %183 = vmatprep.subr.mxu0 0.0
  %184 = vmatpush1.msra.mxu0 0.0
  %185 = vmatprep.subr.mxu0 0.0
  %186 = vmatpush1.msra.mxu0 0.0
  %187 = vmatprep.subr.mxu0 0.0
  %188 = vmatpush1.msra.mxu0 0.0
  %189 = vmatprep.subr.mxu0 0.0
  %190 = vmatpush1.msra.mxu0 0.0
  %191 = vmatprep.subr.mxu0 0.0
  %192 = vmatpush1.msra.mxu0 0.0
  %193 = vmatprep.subr.mxu0 0.0
  %194 = vmatpush1.msra.mxu0 0.0
  %195 = vmatprep.mubr.f32.mxu0 0.0
  %196 = vmatmul.mubr.f32.gmra.mrb[0].mxu0 %v32
  %v197 = vpop.f32.mrb[0].mxu0
  %v198 = vadd.f32 0.0, %v197
  %v199 = vpop.f32.mrb[0].mxu0
  %v200 = vadd.f32 0.0, %v199
  %201 = vdwg.mxu0
  %v202 = vadd.f32 %v123, %v198
  %v203 = vadd.f32 %v124, %v200
  %s204 = scalar_lea.vmem %s5, 16
  %205 = vst [vmem:[%s204] sm:$0xff] %v202
  %206 = vst [vmem:[%s204 + $0x8] sm:$0xff] %v203
  // Predicated region
  $region22: #{ffc_forward.5} parent=0 // pred_check
    _
  $region23: #{ffc_forward.5} parent=0 // pred_check_branch
    %208 = sbr.rel (0) target = $region25
  $region24: #{ffc_forward.5} parent=0 // pred_region
    _
  $region25: #{ffc_forward.5} parent=0 // pred_fallthru
    _
  // Predicated region
  $region26: #{ffc_forward.5} parent=0 // pred_check
    _
  $region27: #{ffc_forward.5} parent=0 // pred_check_branch
    %210 = sbr.rel (0) target = $region29
  $region28: #{ffc_forward.5} parent=0 // pred_region
    _
  $region29: #{ffc_forward.5} parent=0 // pred_fallthru
    _

</llo_original>
